<compile_context>
chip_gen: v7x
topology: tpu7x:2x2x1
jax: 0.10.0
libtpu: 0.0.40
codegen_flags: <defaults>
</compile_context>

<pallas_src>
import jax
import jax.numpy as jnp
from jax.experimental import pallas as pl
from jax.experimental.pallas import tpu as pltpu


# ----------------------------------------------------------------------------
# Model configuration
# ----------------------------------------------------------------------------
DLQ_DIM = 9                     # "first 9 represent one hot encoding for DLQ"
SEQ_N_FEATURES = 16             # 9 DLQ one-hot + 7 numeric seq features
LSTM_SIZE = 32
PIPE = (64, 32)                 # LinearBlock layer sizes
B, T = 8, 8
OUT_DIM = DLQ_DIM * 12          # 108
LANES = 128                     # lane-dense padded width for the MLP head
OUT_PAD = LANES

# (name, num_categories, embedding_dim) — order matches arangeACQ/SEQEmbeddings
ACQ_EMB = (("state_id", 54, 3), ("purpose_id", 4, 2), ("mi_type_id", 4, 2),
           ("occupancy_status_id", 4, 2), ("product_type_id", 3, 2),
           ("property_type_id", 6, 2), ("seller_id", 30, 3), ("zip3_id", 100, 4))
SEQ_EMB = (("yyyymm", 240, 4), ("msa_id", 50, 4), ("servicer_id", 30, 4))

ACQ_E = sum(e for _, _, e in ACQ_EMB)   # 20
SEQ_E = sum(e for _, _, e in SEQ_EMB)   # 12
D_IN = SEQ_N_FEATURES + SEQ_E + ACQ_E   # 48 = LSTM input size
GATE_W = 4 * LSTM_SIZE                  # 128
AUX_W = 16                              # aux input width (dlq + seq_len + pad)

assert D_IN % 8 == 0, "D_IN must be sublane-aligned"
assert GATE_W == LANES, "slab layout assumes 4*LSTM_SIZE == 128"
assert AUX_W > DLQ_DIM + 1

# --- packed weight-slab row offsets (all multiples of 8, all 128 lanes wide) --
R_WIH = 0                          # (D_IN, 128)    LSTM input->gates
R_WHH = R_WIH + D_IN               # (H, 128)       LSTM hidden->gates
R_B   = R_WHH + LSTM_SIZE          # row: LSTM bias
R_W1D = R_B + 8                    # (AUX_W, 128)   W1 dlq part (rows>=9 zero)
R_W1H = R_W1D + AUX_W              # (H, 128)       W1 hidden part
R_B1  = R_W1H + LSTM_SIZE          # row: b1
R_W2  = R_B1 + 8                   # (128, 128)     W2 zero-padded
R_B2  = R_W2 + LANES               # row: b2
R_WO  = R_B2 + 8                   # (128, 128)     Wout zero-padded
R_BO  = R_WO + LANES               # row: bout
SLAB_ROWS = R_BO + 8               # 416


# ----------------------------------------------------------------------------
# Fused Pallas kernel: LSTM recurrence + lastDLQ concat + MLP head + output.
# Whole working set (<250 KB) is VMEM-resident; no grid.
# ----------------------------------------------------------------------------
def fused_kernel(x_ref,      # (T*B, D_IN)   time-major, flattened LSTM input
                 aux_ref,    # (B, AUX_W)    [dlq(9) | seq_len(1) | zeros]
                 w_ref,      # (SLAB_ROWS, 128) packed weights/biases
                 out_ref):   # (B, 128)      lane-dense padded output
    H = LSTM_SIZE
    Bb = aux_ref.shape[0]
    Tt = x_ref.shape[0] // Bb

    # ---- LSTM weights (static, 8-aligned slices of the slab) ----------------
    w_ih = w_ref[R_WIH:R_WIH + D_IN, :]       # (48, 128)
    w_hh = w_ref[R_WHH:R_WHH + H, :]          # (32, 128)
    b = w_ref[R_B:R_B + 1, :]                 # (1, 128)

    # Hoisted input projection for all timesteps at once (one MXU push).
    gx = jnp.dot(x_ref[...], w_ih, preferred_element_type=jnp.float32) + b

    aux = aux_ref[...]                        # (B, 16)
    slen = aux[:, DLQ_DIM:DLQ_DIM + 1]        # (B, 1) seq_len as f32
    slen_bh = jnp.broadcast_to(slen, (Bb, H))           # one-time lane bcast
    valids = [jnp.float32(t) < slen_bh for t in range(Tt)]   # hoisted masks

    h = jnp.zeros((Bb, H), jnp.float32)
    c = jnp.zeros((Bb, H), jnp.float32)

    # Fully-unrolled serial recurrence (T small & static; ~20 vregs live).
    for t in range(Tt):
        gates = (jnp.dot(h, w_hh, preferred_element_type=jnp.float32)
                 + gx[t * Bb:(t + 1) * Bb, :])            # (B, 128)
        sig = jax.nn.sigmoid(gates)                       # full-vreg EUP
        th = jnp.tanh(gates)                              # full-vreg EUP
        i_g = sig[:, 0 * H:1 * H]
        f_g = sig[:, 1 * H:2 * H]
        g_g = th[:, 2 * H:3 * H]
        o_g = sig[:, 3 * H:4 * H]
        c_new = f_g * c + i_g * g_g
        h_new = o_g * jnp.tanh(c_new)
        h = jnp.where(valids[t], h_new, h)                # freeze past seq_len
        c = jnp.where(valids[t], c_new, c)

    # ---- fused MLP head ------------------------------------------------------
    # concat([dlq, h]) @ W1 == aux @ W1D_slab + h @ W1H_slab (seq_len/pad rows
    # of W1D are zero).  All widths padded to 128 lanes -> lane-dense matmuls.
    w1d = w_ref[R_W1D:R_W1D + AUX_W, :]       # (16, 128)
    w1h = w_ref[R_W1H:R_W1H + H, :]           # (32, 128)
    b1 = w_ref[R_B1:R_B1 + 1, :]
    y = jnp.maximum(
        jnp.dot(aux, w1d, preferred_element_type=jnp.float32)
        + jnp.dot(h, w1h, preferred_element_type=jnp.float32) + b1, 0.0)

    w2 = w_ref[R_W2:R_W2 + LANES, :]          # (128, 128) zero-padded
    b2 = w_ref[R_B2:R_B2 + 1, :]
    y = jnp.maximum(jnp.dot(y, w2, preferred_element_type=jnp.float32) + b2, 0.0)

    wo = w_ref[R_WO:R_WO + LANES, :]          # (128, 128) zero-padded
    bo = w_ref[R_BO:R_BO + 1, :]
    out_ref[...] = jnp.dot(y, wo, preferred_element_type=jnp.float32) + bo


def _cost_estimate(Bb, Tt):
    flops = 2 * (Tt * Bb * D_IN * LANES            # input projection
                 + Tt * Bb * LSTM_SIZE * LANES     # recurrence
                 + Bb * AUX_W * LANES + Bb * LSTM_SIZE * LANES   # W1
                 + 2 * Bb * LANES * LANES)         # W2 + Wout
    transcendentals = Tt * Bb * (2 * LANES + LSTM_SIZE)
    bytes_accessed = 4 * (Tt * Bb * D_IN + Bb * AUX_W
                          + SLAB_ROWS * LANES + Bb * OUT_PAD)
    return pl.CostEstimate(flops=flops, transcendentals=transcendentals,
                           bytes_accessed=bytes_accessed)


def fused_forward_pallas(x_tm2d, aux, w_slab):
    Bb = aux.shape[0]
    Tt = x_tm2d.shape[0] // Bb
    vmem = lambda: pl.BlockSpec(memory_space=pltpu.MemorySpace.VMEM)
    return pl.pallas_call(
        fused_kernel,
        out_shape=jax.ShapeDtypeStruct((Bb, OUT_PAD), jnp.float32),
        in_specs=[vmem(), vmem(), vmem()],
        out_specs=vmem(),
        cost_estimate=_cost_estimate(Bb, Tt),
    )(x_tm2d, aux, w_slab)


# ----------------------------------------------------------------------------
# Deterministic parameter init + one-time weight packing (perf item 1 & 2)
# ----------------------------------------------------------------------------
def init_params(key):
    ks = iter(jax.random.split(key, 32))
    p = {}
    p["acq_emb"] = [0.1 * jax.random.normal(next(ks), (n, e), jnp.float32)
                    for _, n, e in ACQ_EMB]
    p["seq_emb"] = [0.1 * jax.random.normal(next(ks), (n, e), jnp.float32)
                    for _, n, e in SEQ_EMB]
    p["w_ih"] = 0.1 * jax.random.normal(next(ks), (D_IN, GATE_W), jnp.float32)
    p["w_hh"] = 0.1 * jax.random.normal(next(ks), (LSTM_SIZE, GATE_W), jnp.float32)
    p["b"] = 0.1 * jax.random.normal(next(ks), (1, GATE_W), jnp.float32)
    lin_in = DLQ_DIM + LSTM_SIZE
    p["w1"] = 0.1 * jax.random.normal(next(ks), (lin_in, PIPE[0]), jnp.float32)
    p["b1"] = 0.1 * jax.random.normal(next(ks), (1, PIPE[0]), jnp.float32)
    p["w2"] = 0.1 * jax.random.normal(next(ks), (PIPE[0], PIPE[1]), jnp.float32)
    p["b2"] = 0.1 * jax.random.normal(next(ks), (1, PIPE[1]), jnp.float32)
    p["wo"] = 0.1 * jax.random.normal(next(ks), (PIPE[1], OUT_DIM), jnp.float32)
    p["bo"] = 0.1 * jax.random.normal(next(ks), (1, OUT_DIM), jnp.float32)
    p["w_slab"] = pack_weights(p)   # packed once, reused every forward call
    return p


def pack_weights(p):
    """Pack every weight/bias into one lane-dense (SLAB_ROWS, 128) f32 slab."""
    slab = jnp.zeros((SLAB_ROWS, LANES), jnp.float32)
    slab = slab.at[R_WIH:R_WIH + D_IN, :].set(p["w_ih"])
    slab = slab.at[R_WHH:R_WHH + LSTM_SIZE, :].set(p["w_hh"])
    slab = slab.at[R_B, :].set(p["b"][0])
    slab = slab.at[R_W1D:R_W1D + DLQ_DIM, :PIPE[0]].set(p["w1"][:DLQ_DIM])
    slab = slab.at[R_W1H:R_W1H + LSTM_SIZE, :PIPE[0]].set(p["w1"][DLQ_DIM:])
    slab = slab.at[R_B1, :PIPE[0]].set(p["b1"][0])
    slab = slab.at[R_W2:R_W2 + PIPE[0], :PIPE[1]].set(p["w2"])
    slab = slab.at[R_B2, :PIPE[1]].set(p["b2"][0])
    slab = slab.at[R_WO:R_WO + PIPE[1], :OUT_DIM].set(p["wo"])
    slab = slab.at[R_BO, :OUT_DIM].set(p["bo"][0])
    return slab


# ----------------------------------------------------------------------------
# Forward pass (embedding gathers / reshapes are plain-JAX glue)
# ----------------------------------------------------------------------------
def build_lstm_input(params, seq, ymd, acq):
    Bb, Tt, _ = seq.shape
    seq_emb = jnp.concatenate(
        [params["seq_emb"][j][ymd[:, :, j]] for j in range(len(SEQ_EMB))], axis=-1)
    acq_emb = jnp.concatenate(
        [params["acq_emb"][j][acq[:, j]] for j in range(len(ACQ_EMB))], axis=-1)
    acq_rep = jnp.broadcast_to(acq_emb[:, None, :], (Bb, Tt, ACQ_E))
    return jnp.concatenate([seq, seq_emb, acq_rep], axis=-1)   # (B, T, D_IN)


@jax.jit
def otcs12_forward(params, seq, seq_len, ymd, acq):
    Bb, Tt, _ = seq.shape
    assert Bb % 8 == 0, "pad batch to a multiple of 8 for vreg-aligned gx slices"
    x = build_lstm_input(params, seq, ymd, acq)                  # (B, T, D_IN)
    x_tm2d = jnp.transpose(x, (1, 0, 2)).reshape(Tt * Bb, D_IN)  # time-major

    # lastDLQ: DLQ one-hot at the last valid timestep (gathered in the wrapper)
    # TODO(synk): seq_len==0 wraps to t=T-1; guard for production inputs.
    dlq = seq[jnp.arange(Bb), seq_len - 1, :DLQ_DIM]             # (B, 9)
    aux = jnp.concatenate(
        [dlq, seq_len.astype(jnp.float32)[:, None],
         jnp.zeros((Bb, AUX_W - DLQ_DIM - 1), jnp.float32)], axis=1)   # (B, 16)

    out_pad = fused_forward_pallas(x_tm2d, aux, params["w_slab"])
    return out_pad[:, :OUT_DIM].reshape(-1, DLQ_DIM, 12)


# ----------------------------------------------------------------------------
# Pure-JAX reference (full f32 matmul precision) for correctness check
# ----------------------------------------------------------------------------
def otcs12_reference(params, seq, seq_len, ymd, acq):
    with jax.default_matmul_precision("highest"):
        Bb = seq.shape[0]
        x = build_lstm_input(params, seq, ymd, acq)
        H = LSTM_SIZE

        def step(carry, inp):
            h, c = carry
            x_t, t = inp
            gates = x_t @ params["w_ih"] + h @ params["w_hh"] + params["b"]
            i_g = jax.nn.sigmoid(gates[:, 0 * H:1 * H])
            f_g = jax.nn.sigmoid(gates[:, 1 * H:2 * H])
            g_g = jnp.tanh(gates[:, 2 * H:3 * H])
            o_g = jax.nn.sigmoid(gates[:, 3 * H:4 * H])
            c_new = f_g * c + i_g * g_g
            h_new = o_g * jnp.tanh(c_new)
            valid = (t < seq_len)[:, None]
            return (jnp.where(valid, h_new, h), jnp.where(valid, c_new, c)), None

        (h, _), _ = jax.lax.scan(
            step, (jnp.zeros((Bb, H)), jnp.zeros((Bb, H))),
            (jnp.transpose(x, (1, 0, 2)), jnp.arange(x.shape[1], dtype=jnp.int32)))

        dlq = seq[jnp.arange(Bb), seq_len - 1, :DLQ_DIM]
        z = jnp.concatenate([dlq, h], axis=1)
        y = jnp.maximum(z @ params["w1"] + params["b1"], 0.0)
        y = jnp.maximum(y @ params["w2"] + params["b2"], 0.0)
        out = y @ params["wo"] + params["bo"]
        return out.reshape(-1, DLQ_DIM, 12)


# ----------------------------------------------------------------------------
if __name__ == "__main__":
    key = jax.random.PRNGKey(0)
    kp, k1, k2, k3, k4, k5 = jax.random.split(key, 6)
    params = init_params(kp)

    # seq: per-timestep features, first DLQ_DIM columns = DLQ one-hot
    dlq_ids = jax.random.randint(k1, (B, T), 0, DLQ_DIM)
    dlq_onehot = jax.nn.one_hot(dlq_ids, DLQ_DIM, dtype=jnp.float32)
    numeric = 0.5 * jax.random.normal(k2, (B, T, SEQ_N_FEATURES - DLQ_DIM), jnp.float32)
    seq = jnp.concatenate([dlq_onehot, numeric], axis=-1)          # (B, T, 16)

    seq_len = jax.random.randint(k3, (B,), 3, T + 1).astype(jnp.int32)   # (B,)
    ymd = jnp.stack([jax.random.randint(k4, (B, T), 0, n) for _, n, _ in SEQ_EMB],
                    axis=-1).astype(jnp.int32)                     # (B, T, 3)
    acq = jnp.stack([jax.random.randint(k5, (B,), 0, n) for _, n, _ in ACQ_EMB],
                    axis=-1).astype(jnp.int32)                     # (B, 8)

    out = otcs12_forward(params, seq, seq_len, ymd, acq)
    jax.block_until_ready(out)

    ref = otcs12_reference(params, seq, seq_len, ymd, acq)
    assert out.shape == (B, DLQ_DIM, 12), out.shape
    max_err = float(jnp.max(jnp.abs(out - ref)))
    assert jnp.allclose(out, ref, rtol=1e-4, atol=1e-4), max_err

    print("KERNEL_OK")
</pallas_src>

<mosaic_0001>
module attributes {stable_mosaic.version = 11 : i64} {
  func.func @fused_kernel(%arg0: memref<64x48xf32, #tpu.memory_space<vmem>>, %arg1: memref<8x16xf32, #tpu.memory_space<vmem>>, %arg2: memref<416x128xf32, #tpu.memory_space<vmem>>, %arg3: memref<8x128xf32, #tpu.memory_space<vmem>>) attributes {dimension_semantics = [], scalar_prefetch = 0 : i64, scratch_operands = 0 : i64, tpu.core_type = #tpu.core_type<tc>} {
    %c0 = arith.constant 0 : index
    %c0_0 = arith.constant 0 : index
    %0 = vector.load %arg2[%c0, %c0_0] : memref<416x128xf32, #tpu.memory_space<vmem>>, vector<48x128xf32>
    %c48 = arith.constant 48 : index
    %c0_1 = arith.constant 0 : index
    %1 = vector.load %arg2[%c48, %c0_1] : memref<416x128xf32, #tpu.memory_space<vmem>>, vector<32x128xf32>
    %c80 = arith.constant 80 : index
    %c0_2 = arith.constant 0 : index
    %2 = vector.load %arg2[%c80, %c0_2] : memref<416x128xf32, #tpu.memory_space<vmem>>, vector<1x128xf32>
    %c0_3 = arith.constant 0 : index
    %c0_4 = arith.constant 0 : index
    %3 = vector.load %arg0[%c0_3, %c0_4] : memref<64x48xf32, #tpu.memory_space<vmem>>, vector<64x48xf32>
    %cst = arith.constant dense<0.000000e+00> : vector<64x128xf32>
    %4 = tpu.matmul %3, %0, %cst {dimension_numbers = #tpu.dot_dimension_numbers<[1], [0], [0], [1], [0, 0, 1, 1], [], []>} : vector<64x48xf32>, vector<48x128xf32>, vector<64x128xf32> -> vector<64x128xf32>
    %5 = vector.broadcast %2 : vector<1x128xf32> to vector<64x128xf32>
    %6 = arith.addf %4, %5 : vector<64x128xf32>
    %c0_5 = arith.constant 0 : index
    %c0_6 = arith.constant 0 : index
    %7 = vector.load %arg1[%c0_5, %c0_6] : memref<8x16xf32, #tpu.memory_space<vmem>>, vector<8x16xf32>
    %8 = vector.extract_strided_slice %7 {offsets = [0, 9], sizes = [8, 1], strides = [1, 1]} : vector<8x16xf32> to vector<8x1xf32>
    %9 = vector.shape_cast %8 : vector<8x1xf32> to vector<8x1xf32>
    %10 = vector.broadcast %9 : vector<8x1xf32> to vector<8x32xf32>
    %cst_7 = arith.constant 0.000000e+00 : f32
    %11 = vector.broadcast %cst_7 : f32 to vector<8x32xf32>
    %12 = arith.cmpf olt, %11, %10 : vector<8x32xf32>
    %cst_8 = arith.constant 1.000000e+00 : f32
    %13 = vector.broadcast %cst_8 : f32 to vector<8x32xf32>
    %14 = arith.cmpf olt, %13, %10 : vector<8x32xf32>
    %cst_9 = arith.constant 2.000000e+00 : f32
    %15 = vector.broadcast %cst_9 : f32 to vector<8x32xf32>
    %16 = arith.cmpf olt, %15, %10 : vector<8x32xf32>
    %cst_10 = arith.constant 3.000000e+00 : f32
    %17 = vector.broadcast %cst_10 : f32 to vector<8x32xf32>
    %18 = arith.cmpf olt, %17, %10 : vector<8x32xf32>
    %cst_11 = arith.constant 4.000000e+00 : f32
    %19 = vector.broadcast %cst_11 : f32 to vector<8x32xf32>
    %20 = arith.cmpf olt, %19, %10 : vector<8x32xf32>
    %cst_12 = arith.constant 5.000000e+00 : f32
    %21 = vector.broadcast %cst_12 : f32 to vector<8x32xf32>
    %22 = arith.cmpf olt, %21, %10 : vector<8x32xf32>
    %cst_13 = arith.constant 6.000000e+00 : f32
    %23 = vector.broadcast %cst_13 : f32 to vector<8x32xf32>
    %24 = arith.cmpf olt, %23, %10 : vector<8x32xf32>
    %cst_14 = arith.constant 7.000000e+00 : f32
    %25 = vector.broadcast %cst_14 : f32 to vector<8x32xf32>
    %26 = arith.cmpf olt, %25, %10 : vector<8x32xf32>
    %cst_15 = arith.constant 0.000000e+00 : f32
    %27 = vector.broadcast %cst_15 : f32 to vector<8x32xf32>
    %cst_16 = arith.constant 0.000000e+00 : f32
    %28 = vector.broadcast %cst_16 : f32 to vector<8x32xf32>
    %cst_17 = arith.constant dense<0.000000e+00> : vector<8x128xf32>
    %29 = tpu.matmul %27, %1, %cst_17 {dimension_numbers = #tpu.dot_dimension_numbers<[1], [0], [0], [1], [0, 0, 1, 1], [], []>} : vector<8x32xf32>, vector<32x128xf32>, vector<8x128xf32> -> vector<8x128xf32>
    %30 = vector.extract_strided_slice %6 {offsets = [0, 0], sizes = [8, 128], strides = [1, 1]} : vector<64x128xf32> to vector<8x128xf32>
    %31 = arith.addf %29, %30 : vector<8x128xf32>
    %32 = arith.negf %31 : vector<8x128xf32>
    %33 = math.exp %32 : vector<8x128xf32>
    %cst_18 = arith.constant 1.000000e+00 : f32
    %34 = vector.broadcast %cst_18 : f32 to vector<8x128xf32>
    %35 = arith.addf %34, %33 : vector<8x128xf32>
    %36 = arith.divf %34, %35 : vector<8x128xf32>
    %37 = math.tanh %31 : vector<8x128xf32>
    %38 = vector.extract_strided_slice %36 {offsets = [0, 0], sizes = [8, 32], strides = [1, 1]} : vector<8x128xf32> to vector<8x32xf32>
    %39 = vector.extract_strided_slice %36 {offsets = [0, 32], sizes = [8, 32], strides = [1, 1]} : vector<8x128xf32> to vector<8x32xf32>
    %40 = vector.extract_strided_slice %37 {offsets = [0, 64], sizes = [8, 32], strides = [1, 1]} : vector<8x128xf32> to vector<8x32xf32>
    %41 = vector.extract_strided_slice %36 {offsets = [0, 96], sizes = [8, 32], strides = [1, 1]} : vector<8x128xf32> to vector<8x32xf32>
    %42 = arith.mulf %39, %28 : vector<8x32xf32>
    %43 = arith.mulf %38, %40 : vector<8x32xf32>
    %44 = arith.addf %42, %43 : vector<8x32xf32>
    %45 = math.tanh %44 : vector<8x32xf32>
    %46 = arith.mulf %41, %45 : vector<8x32xf32>
    %47 = arith.select %12, %46, %27 : vector<8x32xi1>, vector<8x32xf32>
    %48 = arith.select %12, %44, %28 : vector<8x32xi1>, vector<8x32xf32>
    %cst_19 = arith.constant dense<0.000000e+00> : vector<8x128xf32>
    %49 = tpu.matmul %47, %1, %cst_19 {dimension_numbers = #tpu.dot_dimension_numbers<[1], [0], [0], [1], [0, 0, 1, 1], [], []>} : vector<8x32xf32>, vector<32x128xf32>, vector<8x128xf32> -> vector<8x128xf32>
    %50 = vector.extract_strided_slice %6 {offsets = [8, 0], sizes = [8, 128], strides = [1, 1]} : vector<64x128xf32> to vector<8x128xf32>
    %51 = arith.addf %49, %50 : vector<8x128xf32>
    %52 = arith.negf %51 : vector<8x128xf32>
    %53 = math.exp %52 : vector<8x128xf32>
    %cst_20 = arith.constant 1.000000e+00 : f32
    %54 = vector.broadcast %cst_20 : f32 to vector<8x128xf32>
    %55 = arith.addf %54, %53 : vector<8x128xf32>
    %56 = arith.divf %54, %55 : vector<8x128xf32>
    %57 = math.tanh %51 : vector<8x128xf32>
    %58 = vector.extract_strided_slice %56 {offsets = [0, 0], sizes = [8, 32], strides = [1, 1]} : vector<8x128xf32> to vector<8x32xf32>
    %59 = vector.extract_strided_slice %56 {offsets = [0, 32], sizes = [8, 32], strides = [1, 1]} : vector<8x128xf32> to vector<8x32xf32>
    %60 = vector.extract_strided_slice %57 {offsets = [0, 64], sizes = [8, 32], strides = [1, 1]} : vector<8x128xf32> to vector<8x32xf32>
    %61 = vector.extract_strided_slice %56 {offsets = [0, 96], sizes = [8, 32], strides = [1, 1]} : vector<8x128xf32> to vector<8x32xf32>
    %62 = arith.mulf %59, %48 : vector<8x32xf32>
    %63 = arith.mulf %58, %60 : vector<8x32xf32>
    %64 = arith.addf %62, %63 : vector<8x32xf32>
    %65 = math.tanh %64 : vector<8x32xf32>
    %66 = arith.mulf %61, %65 : vector<8x32xf32>
    %67 = arith.select %14, %66, %47 : vector<8x32xi1>, vector<8x32xf32>
    %68 = arith.select %14, %64, %48 : vector<8x32xi1>, vector<8x32xf32>
    %cst_21 = arith.constant dense<0.000000e+00> : vector<8x128xf32>
    %69 = tpu.matmul %67, %1, %cst_21 {dimension_numbers = #tpu.dot_dimension_numbers<[1], [0], [0], [1], [0, 0, 1, 1], [], []>} : vector<8x32xf32>, vector<32x128xf32>, vector<8x128xf32> -> vector<8x128xf32>
    %70 = vector.extract_strided_slice %6 {offsets = [16, 0], sizes = [8, 128], strides = [1, 1]} : vector<64x128xf32> to vector<8x128xf32>
    %71 = arith.addf %69, %70 : vector<8x128xf32>
    %72 = arith.negf %71 : vector<8x128xf32>
    %73 = math.exp %72 : vector<8x128xf32>
    %cst_22 = arith.constant 1.000000e+00 : f32
    %74 = vector.broadcast %cst_22 : f32 to vector<8x128xf32>
    %75 = arith.addf %74, %73 : vector<8x128xf32>
    %76 = arith.divf %74, %75 : vector<8x128xf32>
    %77 = math.tanh %71 : vector<8x128xf32>
    %78 = vector.extract_strided_slice %76 {offsets = [0, 0], sizes = [8, 32], strides = [1, 1]} : vector<8x128xf32> to vector<8x32xf32>
    %79 = vector.extract_strided_slice %76 {offsets = [0, 32], sizes = [8, 32], strides = [1, 1]} : vector<8x128xf32> to vector<8x32xf32>
    %80 = vector.extract_strided_slice %77 {offsets = [0, 64], sizes = [8, 32], strides = [1, 1]} : vector<8x128xf32> to vector<8x32xf32>
    %81 = vector.extract_strided_slice %76 {offsets = [0, 96], sizes = [8, 32], strides = [1, 1]} : vector<8x128xf32> to vector<8x32xf32>
    %82 = arith.mulf %79, %68 : vector<8x32xf32>
    %83 = arith.mulf %78, %80 : vector<8x32xf32>
    %84 = arith.addf %82, %83 : vector<8x32xf32>
    %85 = math.tanh %84 : vector<8x32xf32>
    %86 = arith.mulf %81, %85 : vector<8x32xf32>
    %87 = arith.select %16, %86, %67 : vector<8x32xi1>, vector<8x32xf32>
    %88 = arith.select %16, %84, %68 : vector<8x32xi1>, vector<8x32xf32>
    %cst_23 = arith.constant dense<0.000000e+00> : vector<8x128xf32>
    %89 = tpu.matmul %87, %1, %cst_23 {dimension_numbers = #tpu.dot_dimension_numbers<[1], [0], [0], [1], [0, 0, 1, 1], [], []>} : vector<8x32xf32>, vector<32x128xf32>, vector<8x128xf32> -> vector<8x128xf32>
    %90 = vector.extract_strided_slice %6 {offsets = [24, 0], sizes = [8, 128], strides = [1, 1]} : vector<64x128xf32> to vector<8x128xf32>
    %91 = arith.addf %89, %90 : vector<8x128xf32>
    %92 = arith.negf %91 : vector<8x128xf32>
    %93 = math.exp %92 : vector<8x128xf32>
    %cst_24 = arith.constant 1.000000e+00 : f32
    %94 = vector.broadcast %cst_24 : f32 to vector<8x128xf32>
    %95 = arith.addf %94, %93 : vector<8x128xf32>
    %96 = arith.divf %94, %95 : vector<8x128xf32>
    %97 = math.tanh %91 : vector<8x128xf32>
    %98 = vector.extract_strided_slice %96 {offsets = [0, 0], sizes = [8, 32], strides = [1, 1]} : vector<8x128xf32> to vector<8x32xf32>
    %99 = vector.extract_strided_slice %96 {offsets = [0, 32], sizes = [8, 32], strides = [1, 1]} : vector<8x128xf32> to vector<8x32xf32>
    %100 = vector.extract_strided_slice %97 {offsets = [0, 64], sizes = [8, 32], strides = [1, 1]} : vector<8x128xf32> to vector<8x32xf32>
    %101 = vector.extract_strided_slice %96 {offsets = [0, 96], sizes = [8, 32], strides = [1, 1]} : vector<8x128xf32> to vector<8x32xf32>
    %102 = arith.mulf %99, %88 : vector<8x32xf32>
    %103 = arith.mulf %98, %100 : vector<8x32xf32>
    %104 = arith.addf %102, %103 : vector<8x32xf32>
    %105 = math.tanh %104 : vector<8x32xf32>
    %106 = arith.mulf %101, %105 : vector<8x32xf32>
    %107 = arith.select %18, %106, %87 : vector<8x32xi1>, vector<8x32xf32>
    %108 = arith.select %18, %104, %88 : vector<8x32xi1>, vector<8x32xf32>
    %cst_25 = arith.constant dense<0.000000e+00> : vector<8x128xf32>
    %109 = tpu.matmul %107, %1, %cst_25 {dimension_numbers = #tpu.dot_dimension_numbers<[1], [0], [0], [1], [0, 0, 1, 1], [], []>} : vector<8x32xf32>, vector<32x128xf32>, vector<8x128xf32> -> vector<8x128xf32>
    %110 = vector.extract_strided_slice %6 {offsets = [32, 0], sizes = [8, 128], strides = [1, 1]} : vector<64x128xf32> to vector<8x128xf32>
    %111 = arith.addf %109, %110 : vector<8x128xf32>
    %112 = arith.negf %111 : vector<8x128xf32>
    %113 = math.exp %112 : vector<8x128xf32>
    %cst_26 = arith.constant 1.000000e+00 : f32
    %114 = vector.broadcast %cst_26 : f32 to vector<8x128xf32>
    %115 = arith.addf %114, %113 : vector<8x128xf32>
    %116 = arith.divf %114, %115 : vector<8x128xf32>
    %117 = math.tanh %111 : vector<8x128xf32>
    %118 = vector.extract_strided_slice %116 {offsets = [0, 0], sizes = [8, 32], strides = [1, 1]} : vector<8x128xf32> to vector<8x32xf32>
    %119 = vector.extract_strided_slice %116 {offsets = [0, 32], sizes = [8, 32], strides = [1, 1]} : vector<8x128xf32> to vector<8x32xf32>
    %120 = vector.extract_strided_slice %117 {offsets = [0, 64], sizes = [8, 32], strides = [1, 1]} : vector<8x128xf32> to vector<8x32xf32>
    %121 = vector.extract_strided_slice %116 {offsets = [0, 96], sizes = [8, 32], strides = [1, 1]} : vector<8x128xf32> to vector<8x32xf32>
    %122 = arith.mulf %119, %108 : vector<8x32xf32>
    %123 = arith.mulf %118, %120 : vector<8x32xf32>
    %124 = arith.addf %122, %123 : vector<8x32xf32>
    %125 = math.tanh %124 : vector<8x32xf32>
    %126 = arith.mulf %121, %125 : vector<8x32xf32>
    %127 = arith.select %20, %126, %107 : vector<8x32xi1>, vector<8x32xf32>
    %128 = arith.select %20, %124, %108 : vector<8x32xi1>, vector<8x32xf32>
    %cst_27 = arith.constant dense<0.000000e+00> : vector<8x128xf32>
    %129 = tpu.matmul %127, %1, %cst_27 {dimension_numbers = #tpu.dot_dimension_numbers<[1], [0], [0], [1], [0, 0, 1, 1], [], []>} : vector<8x32xf32>, vector<32x128xf32>, vector<8x128xf32> -> vector<8x128xf32>
    %130 = vector.extract_strided_slice %6 {offsets = [40, 0], sizes = [8, 128], strides = [1, 1]} : vector<64x128xf32> to vector<8x128xf32>
    %131 = arith.addf %129, %130 : vector<8x128xf32>
    %132 = arith.negf %131 : vector<8x128xf32>
    %133 = math.exp %132 : vector<8x128xf32>
    %cst_28 = arith.constant 1.000000e+00 : f32
    %134 = vector.broadcast %cst_28 : f32 to vector<8x128xf32>
    %135 = arith.addf %134, %133 : vector<8x128xf32>
    %136 = arith.divf %134, %135 : vector<8x128xf32>
    %137 = math.tanh %131 : vector<8x128xf32>
    %138 = vector.extract_strided_slice %136 {offsets = [0, 0], sizes = [8, 32], strides = [1, 1]} : vector<8x128xf32> to vector<8x32xf32>
    %139 = vector.extract_strided_slice %136 {offsets = [0, 32], sizes = [8, 32], strides = [1, 1]} : vector<8x128xf32> to vector<8x32xf32>
    %140 = vector.extract_strided_slice %137 {offsets = [0, 64], sizes = [8, 32], strides = [1, 1]} : vector<8x128xf32> to vector<8x32xf32>
    %141 = vector.extract_strided_slice %136 {offsets = [0, 96], sizes = [8, 32], strides = [1, 1]} : vector<8x128xf32> to vector<8x32xf32>
    %142 = arith.mulf %139, %128 : vector<8x32xf32>
    %143 = arith.mulf %138, %140 : vector<8x32xf32>
    %144 = arith.addf %142, %143 : vector<8x32xf32>
    %145 = math.tanh %144 : vector<8x32xf32>
    %146 = arith.mulf %141, %145 : vector<8x32xf32>
    %147 = arith.select %22, %146, %127 : vector<8x32xi1>, vector<8x32xf32>
    %148 = arith.select %22, %144, %128 : vector<8x32xi1>, vector<8x32xf32>
    %cst_29 = arith.constant dense<0.000000e+00> : vector<8x128xf32>
    %149 = tpu.matmul %147, %1, %cst_29 {dimension_numbers = #tpu.dot_dimension_numbers<[1], [0], [0], [1], [0, 0, 1, 1], [], []>} : vector<8x32xf32>, vector<32x128xf32>, vector<8x128xf32> -> vector<8x128xf32>
    %150 = vector.extract_strided_slice %6 {offsets = [48, 0], sizes = [8, 128], strides = [1, 1]} : vector<64x128xf32> to vector<8x128xf32>
    %151 = arith.addf %149, %150 : vector<8x128xf32>
    %152 = arith.negf %151 : vector<8x128xf32>
    %153 = math.exp %152 : vector<8x128xf32>
    %cst_30 = arith.constant 1.000000e+00 : f32
    %154 = vector.broadcast %cst_30 : f32 to vector<8x128xf32>
    %155 = arith.addf %154, %153 : vector<8x128xf32>
    %156 = arith.divf %154, %155 : vector<8x128xf32>
    %157 = math.tanh %151 : vector<8x128xf32>
    %158 = vector.extract_strided_slice %156 {offsets = [0, 0], sizes = [8, 32], strides = [1, 1]} : vector<8x128xf32> to vector<8x32xf32>
    %159 = vector.extract_strided_slice %156 {offsets = [0, 32], sizes = [8, 32], strides = [1, 1]} : vector<8x128xf32> to vector<8x32xf32>
    %160 = vector.extract_strided_slice %157 {offsets = [0, 64], sizes = [8, 32], strides = [1, 1]} : vector<8x128xf32> to vector<8x32xf32>
    %161 = vector.extract_strided_slice %156 {offsets = [0, 96], sizes = [8, 32], strides = [1, 1]} : vector<8x128xf32> to vector<8x32xf32>
    %162 = arith.mulf %159, %148 : vector<8x32xf32>
    %163 = arith.mulf %158, %160 : vector<8x32xf32>
    %164 = arith.addf %162, %163 : vector<8x32xf32>
    %165 = math.tanh %164 : vector<8x32xf32>
    %166 = arith.mulf %161, %165 : vector<8x32xf32>
    %167 = arith.select %24, %166, %147 : vector<8x32xi1>, vector<8x32xf32>
    %168 = arith.select %24, %164, %148 : vector<8x32xi1>, vector<8x32xf32>
    %cst_31 = arith.constant dense<0.000000e+00> : vector<8x128xf32>
    %169 = tpu.matmul %167, %1, %cst_31 {dimension_numbers = #tpu.dot_dimension_numbers<[1], [0], [0], [1], [0, 0, 1, 1], [], []>} : vector<8x32xf32>, vector<32x128xf32>, vector<8x128xf32> -> vector<8x128xf32>
    %170 = vector.extract_strided_slice %6 {offsets = [56, 0], sizes = [8, 128], strides = [1, 1]} : vector<64x128xf32> to vector<8x128xf32>
    %171 = arith.addf %169, %170 : vector<8x128xf32>
    %172 = arith.negf %171 : vector<8x128xf32>
    %173 = math.exp %172 : vector<8x128xf32>
    %cst_32 = arith.constant 1.000000e+00 : f32
    %174 = vector.broadcast %cst_32 : f32 to vector<8x128xf32>
    %175 = arith.addf %174, %173 : vector<8x128xf32>
    %176 = arith.divf %174, %175 : vector<8x128xf32>
    %177 = math.tanh %171 : vector<8x128xf32>
    %178 = vector.extract_strided_slice %176 {offsets = [0, 0], sizes = [8, 32], strides = [1, 1]} : vector<8x128xf32> to vector<8x32xf32>
    %179 = vector.extract_strided_slice %176 {offsets = [0, 32], sizes = [8, 32], strides = [1, 1]} : vector<8x128xf32> to vector<8x32xf32>
    %180 = vector.extract_strided_slice %177 {offsets = [0, 64], sizes = [8, 32], strides = [1, 1]} : vector<8x128xf32> to vector<8x32xf32>
    %181 = vector.extract_strided_slice %176 {offsets = [0, 96], sizes = [8, 32], strides = [1, 1]} : vector<8x128xf32> to vector<8x32xf32>
    %182 = arith.mulf %179, %168 : vector<8x32xf32>
    %183 = arith.mulf %178, %180 : vector<8x32xf32>
    %184 = arith.addf %182, %183 : vector<8x32xf32>
    %185 = math.tanh %184 : vector<8x32xf32>
    %186 = arith.mulf %181, %185 : vector<8x32xf32>
    %187 = arith.select %26, %186, %167 : vector<8x32xi1>, vector<8x32xf32>
    %c88 = arith.constant 88 : index
    %c0_33 = arith.constant 0 : index
    %188 = vector.load %arg2[%c88, %c0_33] : memref<416x128xf32, #tpu.memory_space<vmem>>, vector<16x128xf32>
    %c104 = arith.constant 104 : index
    %c0_34 = arith.constant 0 : index
    %189 = vector.load %arg2[%c104, %c0_34] : memref<416x128xf32, #tpu.memory_space<vmem>>, vector<32x128xf32>
    %c136 = arith.constant 136 : index
    %c0_35 = arith.constant 0 : index
    %190 = vector.load %arg2[%c136, %c0_35] : memref<416x128xf32, #tpu.memory_space<vmem>>, vector<1x128xf32>
    %cst_36 = arith.constant dense<0.000000e+00> : vector<8x128xf32>
    %191 = tpu.matmul %7, %188, %cst_36 {dimension_numbers = #tpu.dot_dimension_numbers<[1], [0], [0], [1], [0, 0, 1, 1], [], []>} : vector<8x16xf32>, vector<16x128xf32>, vector<8x128xf32> -> vector<8x128xf32>
    %cst_37 = arith.constant dense<0.000000e+00> : vector<8x128xf32>
    %192 = tpu.matmul %187, %189, %cst_37 {dimension_numbers = #tpu.dot_dimension_numbers<[1], [0], [0], [1], [0, 0, 1, 1], [], []>} : vector<8x32xf32>, vector<32x128xf32>, vector<8x128xf32> -> vector<8x128xf32>
    %193 = arith.addf %191, %192 : vector<8x128xf32>
    %194 = vector.broadcast %190 : vector<1x128xf32> to vector<8x128xf32>
    %195 = arith.addf %193, %194 : vector<8x128xf32>
    %cst_38 = arith.constant 0.000000e+00 : f32
    %196 = vector.broadcast %cst_38 : f32 to vector<8x128xf32>
    %197 = arith.maximumf %195, %196 : vector<8x128xf32>
    %c144 = arith.constant 144 : index
    %c0_39 = arith.constant 0 : index
    %198 = vector.load %arg2[%c144, %c0_39] : memref<416x128xf32, #tpu.memory_space<vmem>>, vector<128x128xf32>
    %c272 = arith.constant 272 : index
    %c0_40 = arith.constant 0 : index
    %199 = vector.load %arg2[%c272, %c0_40] : memref<416x128xf32, #tpu.memory_space<vmem>>, vector<1x128xf32>
    %cst_41 = arith.constant dense<0.000000e+00> : vector<8x128xf32>
    %200 = tpu.matmul %197, %198, %cst_41 {dimension_numbers = #tpu.dot_dimension_numbers<[1], [0], [0], [1], [0, 0, 1, 1], [], []>} : vector<8x128xf32>, vector<128x128xf32>, vector<8x128xf32> -> vector<8x128xf32>
    %201 = vector.broadcast %199 : vector<1x128xf32> to vector<8x128xf32>
    %202 = arith.addf %200, %201 : vector<8x128xf32>
    %cst_42 = arith.constant 0.000000e+00 : f32
    %203 = vector.broadcast %cst_42 : f32 to vector<8x128xf32>
    %204 = arith.maximumf %202, %203 : vector<8x128xf32>
    %c280 = arith.constant 280 : index
    %c0_43 = arith.constant 0 : index
    %205 = vector.load %arg2[%c280, %c0_43] : memref<416x128xf32, #tpu.memory_space<vmem>>, vector<128x128xf32>
    %c408 = arith.constant 408 : index
    %c0_44 = arith.constant 0 : index
    %206 = vector.load %arg2[%c408, %c0_44] : memref<416x128xf32, #tpu.memory_space<vmem>>, vector<1x128xf32>
    %cst_45 = arith.constant dense<0.000000e+00> : vector<8x128xf32>
    %207 = tpu.matmul %204, %205, %cst_45 {dimension_numbers = #tpu.dot_dimension_numbers<[1], [0], [0], [1], [0, 0, 1, 1], [], []>} : vector<8x128xf32>, vector<128x128xf32>, vector<8x128xf32> -> vector<8x128xf32>
    %208 = vector.broadcast %206 : vector<1x128xf32> to vector<8x128xf32>
    %209 = arith.addf %207, %208 : vector<8x128xf32>
    %c0_46 = arith.constant 0 : index
    %c0_47 = arith.constant 0 : index
    %210 = vector.load %arg3[%c0_46, %c0_47] : memref<8x128xf32, #tpu.memory_space<vmem>>, vector<8x128xf32>
    tpu.vector_store %arg3[%c0_46, %c0_47], %209 {strides = array<i32>} : memref<8x128xf32, #tpu.memory_space<vmem>>, vector<8x128xf32>,
    return
  }
}

</mosaic_0001>

<llo_original>
// kernel: custom-call.22
$region0: #{custom-call.22}
  %s0 = inlined_call_operand.vmem [shape: f32[8,9], index: 0, kind: output, shape index: {}]

// kernel: otcs12_forward.1
$region0: #{otcs12_forward.1}
  #allocation0 [shape = 'u32[]', space=smem, size = 0x4, offset = 0x4, fixed_abs, tag = 'smem constant byte address 0x4 - core index']
  #allocation1 [shape = 'u32[144,128]{1,0:T(1,128)}', space=vmem, size = 0x12000, scoped, tag = 'internal scratch']
  %s0 = inlined_call_operand.vmem [shape: f32[64,48], index: 0, kind: input, shape index: {}]
  %s1 = inlined_call_operand.vmem [shape: f32[8,16], index: 1, kind: input, shape index: {}]
  %s2 = inlined_call_operand.vmem [shape: f32[416,128], index: 2, kind: input, shape index: {}]
  %s3 = inlined_call_operand.vmem [shape: f32[8,128], index: 3, kind: output, shape index: {}]
  %s4 = sld [smem:[#allocation0]]
  $region22: #{otcs12_forward.1} parent=0
    _
  %s6 = ssub.s32 1, %s4
  %s7 = scalar_select 0, %s6, %s4
  // Predicated region
  $region2: #{otcs12_forward.1} parent=0 // pred_check
    _
  $region3: #{otcs12_forward.1} parent=0 // pred_check_branch
    %9 = sbr.rel (0) target = $region5
  $region4: #{otcs12_forward.1} parent=0 // pred_region
    _
  $region5: #{otcs12_forward.1} parent=0 // pred_fallthru
    _
  // Predicated region
  $region6: #{otcs12_forward.1} parent=0 // pred_check
    _
  $region7: #{otcs12_forward.1} parent=0 // pred_check_branch
    %11 = sbr.rel (0) target = $region9
  $region8: #{otcs12_forward.1} parent=0 // pred_region
    _
  $region9: #{otcs12_forward.1} parent=0 // pred_fallthru
    _
  // Predicated region
  $region10: #{otcs12_forward.1} parent=0 // pred_check
    _
  $region11: #{otcs12_forward.1} parent=0 // pred_check_branch
    %13 = sbr.rel (0) target = $region13
  $region12: #{otcs12_forward.1} parent=0 // pred_region
    _
  $region13: #{otcs12_forward.1} parent=0 // pred_fallthru
    _
  %v14 = vld [vmem:[%s2] sm:$0xff]
  %v15 = vld [vmem:[%s2 + $0x8] sm:$0xff]
  %v16 = vld [vmem:[%s2 + $0x10] sm:$0xff]
  %v17 = vld [vmem:[%s2 + $0x18] sm:$0xff]
  %v18 = vld [vmem:[%s2 + $0x20] sm:$0xff]
  %v19 = vld [vmem:[%s2 + $0x28] sm:$0xff]
  %v20 = vld [vmem:[%s2 + $0x30] sm:$0xff]
  %v21 = vld [vmem:[%s2 + $0x38] sm:$0xff]
  %v22 = vld [vmem:[%s2 + $0x40] sm:$0xff]
  %v23 = vld [vmem:[%s2 + $0x48] sm:$0xff]
  %v24 = vld [vmem:[%s2 + $0x50] sm:$0x1]
  %v25 = vld [vmem:[%s0] sm:$0xff]
  %v26 = vld [vmem:[%s0 + $0x8] sm:$0xff]
  %v27 = vld [vmem:[%s0 + $0x10] sm:$0xff]
  %v28 = vld [vmem:[%s0 + $0x18] sm:$0xff]
  %v29 = vld [vmem:[%s0 + $0x20] sm:$0xff]
  %v30 = vld [vmem:[%s0 + $0x28] sm:$0xff]
  %v31 = vld [vmem:[%s0 + $0x30] sm:$0xff]
  %v32 = vld [vmem:[%s0 + $0x38] sm:$0xff]
  %v33 = vlaneseq
  %v34 = vshrl.u32 %v33, 7
  %v35 = vsub.s32 0, %v34
  %v36 = vrot.slane %v24, %v35
  %vm37 = vcmask 392192
  %v39 = vsel %vm37, %v25, 0
  %v42 = vsel %vm37, %v26, 0
  %v45 = vsel %vm37, %v27, 0
  %v48 = vsel %vm37, %v28, 0
  %v51 = vsel %vm37, %v29, 0
  %v54 = vsel %vm37, %v30, 0
  %v57 = vsel %vm37, %v31, 0
  %v60 = vsel %vm37, %v32, 0
  %62 = vmatprep.subr.mxu0 0.0
  %63 = vmatpush1.msra.mxu0 %v14
  %64 = vmatprep.subr.mxu0 0.0
  %65 = vmatpush1.msra.mxu0 %v15
  %66 = vmatprep.subr.mxu0 0.0
  %67 = vmatpush1.msra.mxu0 %v16
  %68 = vmatprep.subr.mxu0 0.0
  %69 = vmatpush1.msra.mxu0 %v17
  %70 = vmatprep.subr.mxu0 0.0
  %71 = vmatpush1.msra.mxu0 %v18
  %72 = vmatprep.subr.mxu0 0.0
  %73 = vmatpush1.msra.mxu0 %v19
  %74 = vmatprep.subr.mxu0 0.0
  %75 = vmatpush1.msra.mxu0 0.0
  %76 = vmatprep.subr.mxu0 0.0
  %77 = vmatpush1.msra.mxu0 0.0
  %78 = vmatprep.subr.mxu0 0.0
  %79 = vmatpush1.msra.mxu0 0.0
  %80 = vmatprep.subr.mxu0 0.0
  %81 = vmatpush1.msra.mxu0 0.0
  %82 = vmatprep.subr.mxu0 0.0
  %83 = vmatpush1.msra.mxu0 0.0
  %84 = vmatprep.subr.mxu0 0.0
  %85 = vmatpush1.msra.mxu0 0.0
  %86 = vmatprep.subr.mxu0 0.0
  %87 = vmatpush1.msra.mxu0 0.0
  %88 = vmatprep.subr.mxu0 0.0
  %89 = vmatpush1.msra.mxu0 0.0
  %90 = vmatprep.subr.mxu0 0.0
  %91 = vmatpush1.msra.mxu0 0.0
  %92 = vmatprep.subr.mxu0 0.0
  %93 = vmatpush1.msra.mxu0 0.0
  %94 = vmatprep.subr.mxu0 0.0
  %95 = vmatpush1.msra.mxu0 0.0
  %96 = vmatprep.subr.mxu0 0.0
  %97 = vmatpush1.msra.mxu0 0.0
  %98 = vmatprep.subr.mxu0 0.0
  %99 = vmatpush1.msra.mxu0 0.0
  %100 = vmatprep.subr.mxu0 0.0
  %101 = vmatpush1.msra.mxu0 0.0
  %102 = vmatprep.subr.mxu0 0.0
  %103 = vmatpush1.msra.mxu0 0.0
  %104 = vmatprep.subr.mxu0 0.0
  %105 = vmatpush1.msra.mxu0 0.0
  %106 = vmatprep.subr.mxu0 0.0
  %107 = vmatpush1.msra.mxu0 0.0
  %108 = vmatprep.subr.mxu0 0.0
  %109 = vmatpush1.msra.mxu0 0.0
  %110 = vmatprep.subr.mxu0 0.0
  %111 = vmatpush1.msra.mxu0 0.0
  %112 = vmatprep.subr.mxu0 0.0
  %113 = vmatpush1.msra.mxu0 0.0
  %114 = vmatprep.subr.mxu0 0.0
  %115 = vmatpush1.msra.mxu0 0.0
  %116 = vmatprep.subr.mxu0 0.0
  %117 = vmatpush1.msra.mxu0 0.0
  %118 = vmatprep.subr.mxu0 0.0
  %119 = vmatpush1.msra.mxu0 0.0
  %120 = vmatprep.subr.mxu0 0.0
  %121 = vmatpush1.msra.mxu0 0.0
  %122 = vmatprep.subr.mxu0 0.0
  %123 = vmatpush1.msra.mxu0 0.0
  %124 = vmatprep.subr.mxu0 0.0
  %125 = vmatpush1.msra.mxu0 0.0
  %126 = vmatprep.mubr.f32.mxu0 0.0
  %127 = vmatmul.mubr.f32.gmra.mrb[0].mxu0 %v39
  %v128 = vpop.f32.mrb[0].mxu0
  %v129 = vadd.f32 %v36, %v128
  %v130 = vpop.f32.mrb[0].mxu0
  %131 = vmatprep.mubr.f32.mxu0 0.0
  %132 = vmatmul.mubr.f32.gmra.mrb[0].mxu0 %v42
  %v133 = vpop.f32.mrb[0].mxu0
  %v134 = vadd.f32 %v36, %v133
  %v135 = vpop.f32.mrb[0].mxu0
  %136 = vmatprep.mubr.f32.mxu0 0.0
  %137 = vmatmul.mubr.f32.gmra.mrb[0].mxu0 %v45
  %v138 = vpop.f32.mrb[0].mxu0
  %v139 = vadd.f32 %v36, %v138
  %v140 = vpop.f32.mrb[0].mxu0
  %141 = vmatprep.mubr.f32.mxu0 0.0
  %142 = vmatmul.mubr.f32.gmra.mrb[0].mxu0 %v48
  %v143 = vpop.f32.mrb[0].mxu0
  %v144 = vadd.f32 %v36, %v143
  %v145 = vpop.f32.mrb[0].mxu0
  %146 = vmatprep.mubr.f32.mxu0 0.0
  %147 = vmatmul.mubr.f32.gmra.mrb[0].mxu0 %v51
  %v148 = vpop.f32.mrb[0].mxu0
  %v149 = vadd.f32 %v36, %v148
  %v150 = vpop.f32.mrb[0].mxu0
  %151 = vmatprep.mubr.f32.mxu0 0.0
  %152 = vmatmul.mubr.f32.gmra.mrb[0].mxu0 %v54
  %v153 = vpop.f32.mrb[0].mxu0
  %v154 = vadd.f32 %v36, %v153
  %v155 = vpop.f32.mrb[0].mxu0
  %156 = vmatprep.mubr.f32.mxu0 0.0
  %157 = vmatmul.mubr.f32.gmra.mrb[0].mxu0 %v57
  %v158 = vpop.f32.mrb[0].mxu0
  %v159 = vadd.f32 %v36, %v158
  %v160 = vpop.f32.mrb[0].mxu0
  %161 = vmatprep.mubr.f32.mxu0 0.0
  %162 = vmatmul.mubr.f32.gmra.mrb[0].mxu0 %v60
  %v163 = vpop.f32.mrb[0].mxu0
  %v164 = vadd.f32 %v36, %v163
  %v165 = vpop.f32.mrb[0].mxu0
  %166 = vdwg.mxu0
  %v167 = vld [vmem:[%s1] sm:$0xff]
  %169 = vset.pattern.permute.xlu0 9
  %170 = vperm.xlu0 %169, %v167
  %v171 = vpop.permute.xlu0 %170
  %vm173 = vcmp.lt.f32.partialorder 0.0, %v171
  %vm174 = vcmp.lt.f32.partialorder 1.0, %v171
  %vm175 = vcmp.lt.f32.partialorder 2.0, %v171
  %vm176 = vcmp.lt.f32.partialorder 3.0, %v171
  %vm177 = vcmp.lt.f32.partialorder 4.0, %v171
  %vm178 = vcmp.lt.f32.partialorder 5.0, %v171
  %vm179 = vcmp.lt.f32.partialorder 6.0, %v171
  %vm180 = vcmp.lt.f32.partialorder 7.0, %v171
  %vm181 = vcmask 261120
  %v183 = vsel %vm181, 0.0, 0
  %185 = vmatprep.subr.mxu0 0.0
  %186 = vmatpush1.msra.mxu0 %v20
  %187 = vmatprep.subr.mxu0 0.0
  %188 = vmatpush1.msra.mxu0 %v21
  %189 = vmatprep.subr.mxu0 0.0
  %190 = vmatpush1.msra.mxu0 %v22
  %191 = vmatprep.subr.mxu0 0.0
  %192 = vmatpush1.msra.mxu0 %v23
  %193 = vmatprep.subr.mxu0 0.0
  %194 = vmatpush1.msra.mxu0 0.0
  %195 = vmatprep.subr.mxu0 0.0
  %196 = vmatpush1.msra.mxu0 0.0
  %197 = vmatprep.subr.mxu0 0.0
  %198 = vmatpush1.msra.mxu0 0.0
  %199 = vmatprep.subr.mxu0 0.0
  %200 = vmatpush1.msra.mxu0 0.0
  %201 = vmatprep.subr.mxu0 0.0
  %202 = vmatpush1.msra.mxu0 0.0
  %203 = vmatprep.subr.mxu0 0.0
  %204 = vmatpush1.msra.mxu0 0.0
  %205 = vmatprep.subr.mxu0 0.0
  %206 = vmatpush1.msra.mxu0 0.0
  %207 = vmatprep.subr.mxu0 0.0
  %208 = vmatpush1.msra.mxu0 0.0
  %209 = vmatprep.subr.mxu0 0.0
  %210 = vmatpush1.msra.mxu0 0.0
  %211 = vmatprep.subr.mxu0 0.0
  %212 = vmatpush1.msra.mxu0 0.0
  %213 = vmatprep.subr.mxu0 0.0
  %214 = vmatpush1.msra.mxu0 0.0
  %215 = vmatprep.subr.mxu0 0.0
  %216 = vmatpush1.msra.mxu0 0.0
  %217 = vmatprep.subr.mxu0 0.0
  %218 = vmatpush1.msra.mxu0 0.0
  %219 = vmatprep.subr.mxu0 0.0
  %220 = vmatpush1.msra.mxu0 0.0
  %221 = vmatprep.subr.mxu0 0.0
  %222 = vmatpush1.msra.mxu0 0.0
  %223 = vmatprep.subr.mxu0 0.0
  %224 = vmatpush1.msra.mxu0 0.0
  %225 = vmatprep.subr.mxu0 0.0
  %226 = vmatpush1.msra.mxu0 0.0
  %227 = vmatprep.subr.mxu0 0.0
  %228 = vmatpush1.msra.mxu0 0.0
  %229 = vmatprep.subr.mxu0 0.0
  %230 = vmatpush1.msra.mxu0 0.0
  %231 = vmatprep.subr.mxu0 0.0
  %232 = vmatpush1.msra.mxu0 0.0
  %233 = vmatprep.subr.mxu0 0.0
  %234 = vmatpush1.msra.mxu0 0.0
  %235 = vmatprep.subr.mxu0 0.0
  %236 = vmatpush1.msra.mxu0 0.0
  %237 = vmatprep.subr.mxu0 0.0
  %238 = vmatpush1.msra.mxu0 0.0
  %239 = vmatprep.subr.mxu0 0.0
  %240 = vmatpush1.msra.mxu0 0.0
  %241 = vmatprep.subr.mxu0 0.0
  %242 = vmatpush1.msra.mxu0 0.0
  %243 = vmatprep.subr.mxu0 0.0
  %244 = vmatpush1.msra.mxu0 0.0
  %245 = vmatprep.subr.mxu0 0.0
  %246 = vmatpush1.msra.mxu0 0.0
  %247 = vmatprep.subr.mxu0 0.0
  %248 = vmatpush1.msra.mxu0 0.0
  %249 = vmatprep.mubr.f32.mxu0 0.0
  %250 = vmatmul.mubr.f32.gmra.mrb[0].mxu0 %v183
  %v251 = vpop.f32.mrb[0].mxu0
  %v252 = vadd.f32 %v129, %v251
  %v253 = vpop.f32.mrb[0].mxu0
  %254 = vdwg.mxu0
  %v255 = vxor.u32 %v252, 2147483648
  %v256 = vmul.f32 %v255, 1.442695
  %v257 = vpow.pop %v256
  %v258 = vadd.f32 %v257, 1.0
  %v259 = vrcp.pop %v258
  %v260 = vmul.f32 1.0, %v259
  %v261 = vtanh.pop %v252
  %v262 = vmul.f32 %v260, 0.0
  %264 = vrot.lane.b32.xlu0 %v261, 64
  %v265 = vpop.permute.xlu0 %264
  %v267 = vmul.f32 %v260, %v265
  %269 = vrot.lane.b32.xlu0 %v267, 32
  %v270 = vpop.permute.xlu0 %269
  %v272 = vadd.f32 %v262, %v270
  %v273 = vtanh.pop %v272
  %275 = vrot.lane.b32.xlu0 %v273, 64
  %v276 = vpop.permute.xlu0 %275
  %v278 = vmul.f32 %v260, %v276
  %v279 = vsel %vm173, %v278, 0.0
  %v280 = vsel %vm173, %v272, 0.0
  %282 = vrot.lane.b32.xlu0 %v279, 32
  %v283 = vpop.permute.xlu0 %282
  %v284 = vsel %vm181, %v283, 0
  %286 = vmatprep.subr.mxu0 0.0
  %287 = vmatpush1.msra.mxu0 %v20
  %288 = vmatprep.subr.mxu0 0.0
  %289 = vmatpush1.msra.mxu0 %v21
  %290 = vmatprep.subr.mxu0 0.0
  %291 = vmatpush1.msra.mxu0 %v22
  %292 = vmatprep.subr.mxu0 0.0
  %293 = vmatpush1.msra.mxu0 %v23
  %294 = vmatprep.subr.mxu0 0.0
  %295 = vmatpush1.msra.mxu0 0.0
  %296 = vmatprep.subr.mxu0 0.0
  %297 = vmatpush1.msra.mxu0 0.0
  %298 = vmatprep.subr.mxu0 0.0
  %299 = vmatpush1.msra.mxu0 0.0
  %300 = vmatprep.subr.mxu0 0.0
  %301 = vmatpush1.msra.mxu0 0.0
  %302 = vmatprep.subr.mxu0 0.0
  %303 = vmatpush1.msra.mxu0 0.0
  %304 = vmatprep.subr.mxu0 0.0
  %305 = vmatpush1.msra.mxu0 0.0
  %306 = vmatprep.subr.mxu0 0.0
  %307 = vmatpush1.msra.mxu0 0.0
  %308 = vmatprep.subr.mxu0 0.0
  %309 = vmatpush1.msra.mxu0 0.0
  %310 = vmatprep.subr.mxu0 0.0
  %311 = vmatpush1.msra.mxu0 0.0
  %312 = vmatprep.subr.mxu0 0.0
  %313 = vmatpush1.msra.mxu0 0.0
  %314 = vmatprep.subr.mxu0 0.0
  %315 = vmatpush1.msra.mxu0 0.0
  %316 = vmatprep.subr.mxu0 0.0
  %317 = vmatpush1.msra.mxu0 0.0
  %318 = vmatprep.subr.mxu0 0.0
  %319 = vmatpush1.msra.mxu0 0.0
  %320 = vmatprep.subr.mxu0 0.0
  %321 = vmatpush1.msra.mxu0 0.0
  %322 = vmatprep.subr.mxu0 0.0
  %323 = vmatpush1.msra.mxu0 0.0
  %324 = vmatprep.subr.mxu0 0.0
  %325 = vmatpush1.msra.mxu0 0.0
  %326 = vmatprep.subr.mxu0 0.0
  %327 = vmatpush1.msra.mxu0 0.0
  %328 = vmatprep.subr.mxu0 0.0
  %329 = vmatpush1.msra.mxu0 0.0
  %330 = vmatprep.subr.mxu0 0.0
  %331 = vmatpush1.msra.mxu0 0.0
  %332 = vmatprep.subr.mxu0 0.0
  %333 = vmatpush1.msra.mxu0 0.0
  %334 = vmatprep.subr.mxu0 0.0
  %335 = vmatpush1.msra.mxu0 0.0
  %336 = vmatprep.subr.mxu0 0.0
  %337 = vmatpush1.msra.mxu0 0.0
  %338 = vmatprep.subr.mxu0 0.0
  %339 = vmatpush1.msra.mxu0 0.0
  %340 = vmatprep.subr.mxu0 0.0
  %341 = vmatpush1.msra.mxu0 0.0
  %342 = vmatprep.subr.mxu0 0.0
  %343 = vmatpush1.msra.mxu0 0.0
  %344 = vmatprep.subr.mxu0 0.0
  %345 = vmatpush1.msra.mxu0 0.0
  %346 = vmatprep.subr.mxu0 0.0
  %347 = vmatpush1.msra.mxu0 0.0
  %348 = vmatprep.subr.mxu0 0.0
  %349 = vmatpush1.msra.mxu0 0.0
  %350 = vmatprep.mubr.f32.mxu0 0.0
  %351 = vmatmul.mubr.f32.gmra.mrb[0].mxu0 %v284
  %v352 = vpop.f32.mrb[0].mxu0
  %v353 = vadd.f32 %v134, %v352
  %v354 = vpop.f32.mrb[0].mxu0
  %355 = vdwg.mxu0
  %v356 = vxor.u32 %v353, 2147483648
  %v357 = vmul.f32 %v356, 1.442695
  %v358 = vpow.pop %v357
  %v359 = vadd.f32 %v358, 1.0
  %v360 = vrcp.pop %v359
  %v361 = vmul.f32 1.0, %v360
  %v362 = vtanh.pop %v353
  %v363 = vmul.f32 %v361, %v280
  %365 = vrot.lane.b32.xlu0 %v362, 64
  %v366 = vpop.permute.xlu0 %365
  %v368 = vmul.f32 %v361, %v366
  %370 = vrot.lane.b32.xlu0 %v368, 32
  %v371 = vpop.permute.xlu0 %370
  %v373 = vadd.f32 %v363, %v371
  %v374 = vtanh.pop %v373
  %376 = vrot.lane.b32.xlu0 %v374, 64
  %v377 = vpop.permute.xlu0 %376
  %v379 = vmul.f32 %v361, %v377
  %v380 = vsel %vm174, %v379, %v279
  %v381 = vsel %vm174, %v373, %v280
  %383 = vrot.lane.b32.xlu0 %v380, 32
  %v384 = vpop.permute.xlu0 %383
  %v385 = vsel %vm181, %v384, 0
  %387 = vmatprep.subr.mxu0 0.0
  %388 = vmatpush1.msra.mxu0 %v20
  %389 = vmatprep.subr.mxu0 0.0
  %390 = vmatpush1.msra.mxu0 %v21
  %391 = vmatprep.subr.mxu0 0.0
  %392 = vmatpush1.msra.mxu0 %v22
  %393 = vmatprep.subr.mxu0 0.0
  %394 = vmatpush1.msra.mxu0 %v23
  %395 = vmatprep.subr.mxu0 0.0
  %396 = vmatpush1.msra.mxu0 0.0
  %397 = vmatprep.subr.mxu0 0.0
  %398 = vmatpush1.msra.mxu0 0.0
  %399 = vmatprep.subr.mxu0 0.0
  %400 = vmatpush1.msra.mxu0 0.0
  %401 = vmatprep.subr.mxu0 0.0
  %402 = vmatpush1.msra.mxu0 0.0
  %403 = vmatprep.subr.mxu0 0.0
  %404 = vmatpush1.msra.mxu0 0.0
  %405 = vmatprep.subr.mxu0 0.0
  %406 = vmatpush1.msra.mxu0 0.0
  %407 = vmatprep.subr.mxu0 0.0
  %408 = vmatpush1.msra.mxu0 0.0
  %409 = vmatprep.subr.mxu0 0.0
  %410 = vmatpush1.msra.mxu0 0.0
  %411 = vmatprep.subr.mxu0 0.0
  %412 = vmatpush1.msra.mxu0 0.0
  %413 = vmatprep.subr.mxu0 0.0
  %414 = vmatpush1.msra.mxu0 0.0
  %415 = vmatprep.subr.mxu0 0.0
  %416 = vmatpush1.msra.mxu0 0.0
  %417 = vmatprep.subr.mxu0 0.0
  %418 = vmatpush1.msra.mxu0 0.0
  %419 = vmatprep.subr.mxu0 0.0
  %420 = vmatpush1.msra.mxu0 0.0
  %421 = vmatprep.subr.mxu0 0.0
  %422 = vmatpush1.msra.mxu0 0.0
  %423 = vmatprep.subr.mxu0 0.0
  %424 = vmatpush1.msra.mxu0 0.0
  %425 = vmatprep.subr.mxu0 0.0
  %426 = vmatpush1.msra.mxu0 0.0
  %427 = vmatprep.subr.mxu0 0.0
  %428 = vmatpush1.msra.mxu0 0.0
  %429 = vmatprep.subr.mxu0 0.0
  %430 = vmatpush1.msra.mxu0 0.0
  %431 = vmatprep.subr.mxu0 0.0
  %432 = vmatpush1.msra.mxu0 0.0
  %433 = vmatprep.subr.mxu0 0.0
  %434 = vmatpush1.msra.mxu0 0.0
  %435 = vmatprep.subr.mxu0 0.0
  %436 = vmatpush1.msra.mxu0 0.0
  %437 = vmatprep.subr.mxu0 0.0
  %438 = vmatpush1.msra.mxu0 0.0
  %439 = vmatprep.subr.mxu0 0.0
  %440 = vmatpush1.msra.mxu0 0.0
  %441 = vmatprep.subr.mxu0 0.0
  %442 = vmatpush1.msra.mxu0 0.0
  %443 = vmatprep.subr.mxu0 0.0
  %444 = vmatpush1.msra.mxu0 0.0
  %445 = vmatprep.subr.mxu0 0.0
  %446 = vmatpush1.msra.mxu0 0.0
  %447 = vmatprep.subr.mxu0 0.0
  %448 = vmatpush1.msra.mxu0 0.0
  %449 = vmatprep.subr.mxu0 0.0
  %450 = vmatpush1.msra.mxu0 0.0
  %451 = vmatprep.mubr.f32.mxu0 0.0
  %452 = vmatmul.mubr.f32.gmra.mrb[0].mxu0 %v385
  %v453 = vpop.f32.mrb[0].mxu0
  %v454 = vadd.f32 %v139, %v453
  %v455 = vpop.f32.mrb[0].mxu0
  %456 = vdwg.mxu0
  %v457 = vxor.u32 %v454, 2147483648
  %v458 = vmul.f32 %v457, 1.442695
  %v459 = vpow.pop %v458
  %v460 = vadd.f32 %v459, 1.0
  %v461 = vrcp.pop %v460
  %v462 = vmul.f32 1.0, %v461
  %v463 = vtanh.pop %v454
  %v464 = vmul.f32 %v462, %v381
  %466 = vrot.lane.b32.xlu0 %v463, 64
  %v467 = vpop.permute.xlu0 %466
  %v469 = vmul.f32 %v462, %v467
  %471 = vrot.lane.b32.xlu0 %v469, 32
  %v472 = vpop.permute.xlu0 %471
  %v474 = vadd.f32 %v464, %v472
  %v475 = vtanh.pop %v474
  %477 = vrot.lane.b32.xlu0 %v475, 64
  %v478 = vpop.permute.xlu0 %477
  %v480 = vmul.f32 %v462, %v478
  %v481 = vsel %vm175, %v480, %v380
  %v482 = vsel %vm175, %v474, %v381
  %484 = vrot.lane.b32.xlu0 %v481, 32
  %v485 = vpop.permute.xlu0 %484
  %v486 = vsel %vm181, %v485, 0
  %488 = vmatprep.subr.mxu0 0.0
  %489 = vmatpush1.msra.mxu0 %v20
  %490 = vmatprep.subr.mxu0 0.0
  %491 = vmatpush1.msra.mxu0 %v21
  %492 = vmatprep.subr.mxu0 0.0
  %493 = vmatpush1.msra.mxu0 %v22
  %494 = vmatprep.subr.mxu0 0.0
  %495 = vmatpush1.msra.mxu0 %v23
  %496 = vmatprep.subr.mxu0 0.0
  %497 = vmatpush1.msra.mxu0 0.0
  %498 = vmatprep.subr.mxu0 0.0
  %499 = vmatpush1.msra.mxu0 0.0
  %500 = vmatprep.subr.mxu0 0.0
  %501 = vmatpush1.msra.mxu0 0.0
  %502 = vmatprep.subr.mxu0 0.0
  %503 = vmatpush1.msra.mxu0 0.0
  %504 = vmatprep.subr.mxu0 0.0
  %505 = vmatpush1.msra.mxu0 0.0
  %506 = vmatprep.subr.mxu0 0.0
  %507 = vmatpush1.msra.mxu0 0.0
  %508 = vmatprep.subr.mxu0 0.0
  %509 = vmatpush1.msra.mxu0 0.0
  %510 = vmatprep.subr.mxu0 0.0
  %511 = vmatpush1.msra.mxu0 0.0
  %512 = vmatprep.subr.mxu0 0.0
  %513 = vmatpush1.msra.mxu0 0.0
  %514 = vmatprep.subr.mxu0 0.0
  %515 = vmatpush1.msra.mxu0 0.0
  %516 = vmatprep.subr.mxu0 0.0
  %517 = vmatpush1.msra.mxu0 0.0
  %518 = vmatprep.subr.mxu0 0.0
  %519 = vmatpush1.msra.mxu0 0.0
  %520 = vmatprep.subr.mxu0 0.0
  %521 = vmatpush1.msra.mxu0 0.0
  %522 = vmatprep.subr.mxu0 0.0
  %523 = vmatpush1.msra.mxu0 0.0
  %524 = vmatprep.subr.mxu0 0.0
  %525 = vmatpush1.msra.mxu0 0.0
  %526 = vmatprep.subr.mxu0 0.0
  %527 = vmatpush1.msra.mxu0 0.0
  %528 = vmatprep.subr.mxu0 0.0
  %529 = vmatpush1.msra.mxu0 0.0
  %530 = vmatprep.subr.mxu0 0.0
  %531 = vmatpush1.msra.mxu0 0.0
  %532 = vmatprep.subr.mxu0 0.0
  %533 = vmatpush1.msra.mxu0 0.0
  %534 = vmatprep.subr.mxu0 0.0
  %535 = vmatpush1.msra.mxu0 0.0
  %536 = vmatprep.subr.mxu0 0.0
  %537 = vmatpush1.msra.mxu0 0.0
  %538 = vmatprep.subr.mxu0 0.0
  %539 = vmatpush1.msra.mxu0 0.0
  %540 = vmatprep.subr.mxu0 0.0
  %541 = vmatpush1.msra.mxu0 0.0
  %542 = vmatprep.subr.mxu0 0.0
  %543 = vmatpush1.msra.mxu0 0.0
  %544 = vmatprep.subr.mxu0 0.0
  %545 = vmatpush1.msra.mxu0 0.0
  %546 = vmatprep.subr.mxu0 0.0
  %547 = vmatpush1.msra.mxu0 0.0
  %548 = vmatprep.subr.mxu0 0.0
  %549 = vmatpush1.msra.mxu0 0.0
  %550 = vmatprep.subr.mxu0 0.0
  %551 = vmatpush1.msra.mxu0 0.0
  %552 = vmatprep.mubr.f32.mxu0 0.0
  %553 = vmatmul.mubr.f32.gmra.mrb[0].mxu0 %v486
  %v554 = vpop.f32.mrb[0].mxu0
  %v555 = vadd.f32 %v144, %v554
  %v556 = vpop.f32.mrb[0].mxu0
  %557 = vdwg.mxu0
  %v558 = vxor.u32 %v555, 2147483648
  %v559 = vmul.f32 %v558, 1.442695
  %v560 = vpow.pop %v559
  %v561 = vadd.f32 %v560, 1.0
  %v562 = vrcp.pop %v561
  %v563 = vmul.f32 1.0, %v562
  %v564 = vtanh.pop %v555
  %v565 = vmul.f32 %v563, %v482
  %567 = vrot.lane.b32.xlu0 %v564, 64
  %v568 = vpop.permute.xlu0 %567
  %v570 = vmul.f32 %v563, %v568
  %572 = vrot.lane.b32.xlu0 %v570, 32
  %v573 = vpop.permute.xlu0 %572
  %v575 = vadd.f32 %v565, %v573
  %v576 = vtanh.pop %v575
  %578 = vrot.lane.b32.xlu0 %v576, 64
  %v579 = vpop.permute.xlu0 %578
  %v581 = vmul.f32 %v563, %v579
  %v582 = vsel %vm176, %v581, %v481
  %v583 = vsel %vm176, %v575, %v482
  %585 = vrot.lane.b32.xlu0 %v582, 32
  %v586 = vpop.permute.xlu0 %585
  %v587 = vsel %vm181, %v586, 0
  %589 = vmatprep.subr.mxu0 0.0
  %590 = vmatpush1.msra.mxu0 %v20
  %591 = vmatprep.subr.mxu0 0.0
  %592 = vmatpush1.msra.mxu0 %v21
  %593 = vmatprep.subr.mxu0 0.0
  %594 = vmatpush1.msra.mxu0 %v22
  %595 = vmatprep.subr.mxu0 0.0
  %596 = vmatpush1.msra.mxu0 %v23
  %597 = vmatprep.subr.mxu0 0.0
  %598 = vmatpush1.msra.mxu0 0.0
  %599 = vmatprep.subr.mxu0 0.0
  %600 = vmatpush1.msra.mxu0 0.0
  %601 = vmatprep.subr.mxu0 0.0
  %602 = vmatpush1.msra.mxu0 0.0
  %603 = vmatprep.subr.mxu0 0.0
  %604 = vmatpush1.msra.mxu0 0.0
  %605 = vmatprep.subr.mxu0 0.0
  %606 = vmatpush1.msra.mxu0 0.0
  %607 = vmatprep.subr.mxu0 0.0
  %608 = vmatpush1.msra.mxu0 0.0
  %609 = vmatprep.subr.mxu0 0.0
  %610 = vmatpush1.msra.mxu0 0.0
  %611 = vmatprep.subr.mxu0 0.0
  %612 = vmatpush1.msra.mxu0 0.0
  %613 = vmatprep.subr.mxu0 0.0
  %614 = vmatpush1.msra.mxu0 0.0
  %615 = vmatprep.subr.mxu0 0.0
  %616 = vmatpush1.msra.mxu0 0.0
  %617 = vmatprep.subr.mxu0 0.0
  %618 = vmatpush1.msra.mxu0 0.0
  %619 = vmatprep.subr.mxu0 0.0
  %620 = vmatpush1.msra.mxu0 0.0
  %621 = vmatprep.subr.mxu0 0.0
  %622 = vmatpush1.msra.mxu0 0.0
  %623 = vmatprep.subr.mxu0 0.0
  %624 = vmatpush1.msra.mxu0 0.0
  %625 = vmatprep.subr.mxu0 0.0
  %626 = vmatpush1.msra.mxu0 0.0
  %627 = vmatprep.subr.mxu0 0.0
  %628 = vmatpush1.msra.mxu0 0.0
  %629 = vmatprep.subr.mxu0 0.0
  %630 = vmatpush1.msra.mxu0 0.0
  %631 = vmatprep.subr.mxu0 0.0
  %632 = vmatpush1.msra.mxu0 0.0
  %633 = vmatprep.subr.mxu0 0.0
  %634 = vmatpush1.msra.mxu0 0.0
  %635 = vmatprep.subr.mxu0 0.0
  %636 = vmatpush1.msra.mxu0 0.0
  %637 = vmatprep.subr.mxu0 0.0
  %638 = vmatpush1.msra.mxu0 0.0
  %639 = vmatprep.subr.mxu0 0.0
  %640 = vmatpush1.msra.mxu0 0.0
  %641 = vmatprep.subr.mxu0 0.0
  %642 = vmatpush1.msra.mxu0 0.0
  %643 = vmatprep.subr.mxu0 0.0
  %644 = vmatpush1.msra.mxu0 0.0
  %645 = vmatprep.subr.mxu0 0.0
  %646 = vmatpush1.msra.mxu0 0.0
  %647 = vmatprep.subr.mxu0 0.0
  %648 = vmatpush1.msra.mxu0 0.0
  %649 = vmatprep.subr.mxu0 0.0
  %650 = vmatpush1.msra.mxu0 0.0
  %651 = vmatprep.subr.mxu0 0.0
  %652 = vmatpush1.msra.mxu0 0.0
  %653 = vmatprep.mubr.f32.mxu0 0.0
  %654 = vmatmul.mubr.f32.gmra.mrb[0].mxu0 %v587
  %v655 = vpop.f32.mrb[0].mxu0
  %v656 = vadd.f32 %v149, %v655
  %v657 = vpop.f32.mrb[0].mxu0
  %658 = vdwg.mxu0
  %v659 = vxor.u32 %v656, 2147483648
  %v660 = vmul.f32 %v659, 1.442695
  %v661 = vpow.pop %v660
  %v662 = vadd.f32 %v661, 1.0
  %v663 = vrcp.pop %v662
  %v664 = vmul.f32 1.0, %v663
  %v665 = vtanh.pop %v656
  %v666 = vmul.f32 %v664, %v583
  %668 = vrot.lane.b32.xlu0 %v665, 64
  %v669 = vpop.permute.xlu0 %668
  %v671 = vmul.f32 %v664, %v669
  %673 = vrot.lane.b32.xlu0 %v671, 32
  %v674 = vpop.permute.xlu0 %673
  %v676 = vadd.f32 %v666, %v674
  %v677 = vtanh.pop %v676
  %679 = vrot.lane.b32.xlu0 %v677, 64
  %v680 = vpop.permute.xlu0 %679
  %v682 = vmul.f32 %v664, %v680
  %v683 = vsel %vm177, %v682, %v582
  %v684 = vsel %vm177, %v676, %v583
  %686 = vrot.lane.b32.xlu0 %v683, 32
  %v687 = vpop.permute.xlu0 %686
  %v688 = vsel %vm181, %v687, 0
  %690 = vmatprep.subr.mxu0 0.0
  %691 = vmatpush1.msra.mxu0 %v20
  %692 = vmatprep.subr.mxu0 0.0
  %693 = vmatpush1.msra.mxu0 %v21
  %694 = vmatprep.subr.mxu0 0.0
  %695 = vmatpush1.msra.mxu0 %v22
  %696 = vmatprep.subr.mxu0 0.0
  %697 = vmatpush1.msra.mxu0 %v23
  %698 = vmatprep.subr.mxu0 0.0
  %699 = vmatpush1.msra.mxu0 0.0
  %700 = vmatprep.subr.mxu0 0.0
  %701 = vmatpush1.msra.mxu0 0.0
  %702 = vmatprep.subr.mxu0 0.0
  %703 = vmatpush1.msra.mxu0 0.0
  %704 = vmatprep.subr.mxu0 0.0
  %705 = vmatpush1.msra.mxu0 0.0
  %706 = vmatprep.subr.mxu0 0.0
  %707 = vmatpush1.msra.mxu0 0.0
  %708 = vmatprep.subr.mxu0 0.0
  %709 = vmatpush1.msra.mxu0 0.0
  %710 = vmatprep.subr.mxu0 0.0
  %711 = vmatpush1.msra.mxu0 0.0
  %712 = vmatprep.subr.mxu0 0.0
  %713 = vmatpush1.msra.mxu0 0.0
  %714 = vmatprep.subr.mxu0 0.0
  %715 = vmatpush1.msra.mxu0 0.0
  %716 = vmatprep.subr.mxu0 0.0
  %717 = vmatpush1.msra.mxu0 0.0
  %718 = vmatprep.subr.mxu0 0.0
  %719 = vmatpush1.msra.mxu0 0.0
  %720 = vmatprep.subr.mxu0 0.0
  %721 = vmatpush1.msra.mxu0 0.0
  %722 = vmatprep.subr.mxu0 0.0
  %723 = vmatpush1.msra.mxu0 0.0
  %724 = vmatprep.subr.mxu0 0.0
  %725 = vmatpush1.msra.mxu0 0.0
  %726 = vmatprep.subr.mxu0 0.0
  %727 = vmatpush1.msra.mxu0 0.0
  %728 = vmatprep.subr.mxu0 0.0
  %729 = vmatpush1.msra.mxu0 0.0
  %730 = vmatprep.subr.mxu0 0.0
  %731 = vmatpush1.msra.mxu0 0.0
  %732 = vmatprep.subr.mxu0 0.0
  %733 = vmatpush1.msra.mxu0 0.0
  %734 = vmatprep.subr.mxu0 0.0
  %735 = vmatpush1.msra.mxu0 0.0
  %736 = vmatprep.subr.mxu0 0.0
  %737 = vmatpush1.msra.mxu0 0.0
  %738 = vmatprep.subr.mxu0 0.0
  %739 = vmatpush1.msra.mxu0 0.0
  %740 = vmatprep.subr.mxu0 0.0
  %741 = vmatpush1.msra.mxu0 0.0
  %742 = vmatprep.subr.mxu0 0.0
  %743 = vmatpush1.msra.mxu0 0.0
  %744 = vmatprep.subr.mxu0 0.0
  %745 = vmatpush1.msra.mxu0 0.0
  %746 = vmatprep.subr.mxu0 0.0
  %747 = vmatpush1.msra.mxu0 0.0
  %748 = vmatprep.subr.mxu0 0.0
  %749 = vmatpush1.msra.mxu0 0.0
  %750 = vmatprep.subr.mxu0 0.0
  %751 = vmatpush1.msra.mxu0 0.0
  %752 = vmatprep.subr.mxu0 0.0
  %753 = vmatpush1.msra.mxu0 0.0
  %754 = vmatprep.mubr.f32.mxu0 0.0
  %755 = vmatmul.mubr.f32.gmra.mrb[0].mxu0 %v688
  %v756 = vpop.f32.mrb[0].mxu0
  %v757 = vadd.f32 %v154, %v756
  %v758 = vpop.f32.mrb[0].mxu0
  %759 = vdwg.mxu0
  %v760 = vxor.u32 %v757, 2147483648
  %v761 = vmul.f32 %v760, 1.442695
  %v762 = vpow.pop %v761
  %v763 = vadd.f32 %v762, 1.0
  %v764 = vrcp.pop %v763
  %v765 = vmul.f32 1.0, %v764
  %v766 = vtanh.pop %v757
  %v767 = vmul.f32 %v765, %v684
  %769 = vrot.lane.b32.xlu0 %v766, 64
  %v770 = vpop.permute.xlu0 %769
  %v772 = vmul.f32 %v765, %v770
  %774 = vrot.lane.b32.xlu0 %v772, 32
  %v775 = vpop.permute.xlu0 %774
  %v777 = vadd.f32 %v767, %v775
  %v778 = vtanh.pop %v777
  %780 = vrot.lane.b32.xlu0 %v778, 64
  %v781 = vpop.permute.xlu0 %780
  %v783 = vmul.f32 %v765, %v781
  %v784 = vsel %vm178, %v783, %v683
  %v785 = vsel %vm178, %v777, %v684
  %787 = vrot.lane.b32.xlu0 %v784, 32
  %v788 = vpop.permute.xlu0 %787
  %v789 = vsel %vm181, %v788, 0
  %791 = vmatprep.subr.mxu0 0.0
  %792 = vmatpush1.msra.mxu0 %v20
  %793 = vmatprep.subr.mxu0 0.0
  %794 = vmatpush1.msra.mxu0 %v21
  %795 = vmatprep.subr.mxu0 0.0
  %796 = vmatpush1.msra.mxu0 %v22
  %797 = vmatprep.subr.mxu0 0.0
  %798 = vmatpush1.msra.mxu0 %v23
  %799 = vmatprep.subr.mxu0 0.0
  %800 = vmatpush1.msra.mxu0 0.0
  %801 = vmatprep.subr.mxu0 0.0
  %802 = vmatpush1.msra.mxu0 0.0
  %803 = vmatprep.subr.mxu0 0.0
  %804 = vmatpush1.msra.mxu0 0.0
  %805 = vmatprep.subr.mxu0 0.0
  %806 = vmatpush1.msra.mxu0 0.0
  %807 = vmatprep.subr.mxu0 0.0
  %808 = vmatpush1.msra.mxu0 0.0
  %809 = vmatprep.subr.mxu0 0.0
  %810 = vmatpush1.msra.mxu0 0.0
  %811 = vmatprep.subr.mxu0 0.0
  %812 = vmatpush1.msra.mxu0 0.0
  %813 = vmatprep.subr.mxu0 0.0
  %814 = vmatpush1.msra.mxu0 0.0
  %815 = vmatprep.subr.mxu0 0.0
  %816 = vmatpush1.msra.mxu0 0.0
  %817 = vmatprep.subr.mxu0 0.0
  %818 = vmatpush1.msra.mxu0 0.0
  %819 = vmatprep.subr.mxu0 0.0
  %820 = vmatpush1.msra.mxu0 0.0
  %821 = vmatprep.subr.mxu0 0.0
  %822 = vmatpush1.msra.mxu0 0.0
  %823 = vmatprep.subr.mxu0 0.0
  %824 = vmatpush1.msra.mxu0 0.0
  %825 = vmatprep.subr.mxu0 0.0
  %826 = vmatpush1.msra.mxu0 0.0
  %827 = vmatprep.subr.mxu0 0.0
  %828 = vmatpush1.msra.mxu0 0.0
  %829 = vmatprep.subr.mxu0 0.0
  %830 = vmatpush1.msra.mxu0 0.0
  %831 = vmatprep.subr.mxu0 0.0
  %832 = vmatpush1.msra.mxu0 0.0
  %833 = vmatprep.subr.mxu0 0.0
  %834 = vmatpush1.msra.mxu0 0.0
  %835 = vmatprep.subr.mxu0 0.0
  %836 = vmatpush1.msra.mxu0 0.0
  %837 = vmatprep.subr.mxu0 0.0
  %838 = vmatpush1.msra.mxu0 0.0
  %839 = vmatprep.subr.mxu0 0.0
  %840 = vmatpush1.msra.mxu0 0.0
  %841 = vmatprep.subr.mxu0 0.0
  %842 = vmatpush1.msra.mxu0 0.0
  %843 = vmatprep.subr.mxu0 0.0
  %844 = vmatpush1.msra.mxu0 0.0
  %845 = vmatprep.subr.mxu0 0.0
  %846 = vmatpush1.msra.mxu0 0.0
  %847 = vmatprep.subr.mxu0 0.0
  %848 = vmatpush1.msra.mxu0 0.0
  %849 = vmatprep.subr.mxu0 0.0
  %850 = vmatpush1.msra.mxu0 0.0
  %851 = vmatprep.subr.mxu0 0.0
  %852 = vmatpush1.msra.mxu0 0.0
  %853 = vmatprep.subr.mxu0 0.0
  %854 = vmatpush1.msra.mxu0 0.0
  %855 = vmatprep.mubr.f32.mxu0 0.0
  %856 = vmatmul.mubr.f32.gmra.mrb[0].mxu0 %v789
  %v857 = vpop.f32.mrb[0].mxu0
  %v858 = vadd.f32 %v159, %v857
  %v859 = vpop.f32.mrb[0].mxu0
  %860 = vdwg.mxu0
  %v861 = vxor.u32 %v858, 2147483648
  %v862 = vmul.f32 %v861, 1.442695
  %v863 = vpow.pop %v862
  %v864 = vadd.f32 %v863, 1.0
  %v865 = vrcp.pop %v864
  %v866 = vmul.f32 1.0, %v865
  %v867 = vtanh.pop %v858
  %v868 = vmul.f32 %v866, %v785
  %870 = vrot.lane.b32.xlu0 %v867, 64
  %v871 = vpop.permute.xlu0 %870
  %v873 = vmul.f32 %v866, %v871
  %875 = vrot.lane.b32.xlu0 %v873, 32
  %v876 = vpop.permute.xlu0 %875
  %v878 = vadd.f32 %v868, %v876
  %v879 = vtanh.pop %v878
  %881 = vrot.lane.b32.xlu0 %v879, 64
  %v882 = vpop.permute.xlu0 %881
  %v884 = vmul.f32 %v866, %v882
  %v885 = vsel %vm179, %v884, %v784
  %v886 = vsel %vm179, %v878, %v785
  %888 = vrot.lane.b32.xlu0 %v885, 32
  %v889 = vpop.permute.xlu0 %888
  %v890 = vsel %vm181, %v889, 0
  %892 = vmatprep.subr.mxu0 0.0
  %893 = vmatpush1.msra.mxu0 %v20
  %894 = vmatprep.subr.mxu0 0.0
  %895 = vmatpush1.msra.mxu0 %v21
  %896 = vmatprep.subr.mxu0 0.0
  %897 = vmatpush1.msra.mxu0 %v22
  %898 = vmatprep.subr.mxu0 0.0
  %899 = vmatpush1.msra.mxu0 %v23
  %900 = vmatprep.subr.mxu0 0.0
  %901 = vmatpush1.msra.mxu0 0.0
  %902 = vmatprep.subr.mxu0 0.0
  %903 = vmatpush1.msra.mxu0 0.0
  %904 = vmatprep.subr.mxu0 0.0
  %905 = vmatpush1.msra.mxu0 0.0
  %906 = vmatprep.subr.mxu0 0.0
  %907 = vmatpush1.msra.mxu0 0.0
  %908 = vmatprep.subr.mxu0 0.0
  %909 = vmatpush1.msra.mxu0 0.0
  %910 = vmatprep.subr.mxu0 0.0
  %911 = vmatpush1.msra.mxu0 0.0
  %912 = vmatprep.subr.mxu0 0.0
  %913 = vmatpush1.msra.mxu0 0.0
  %914 = vmatprep.subr.mxu0 0.0
  %915 = vmatpush1.msra.mxu0 0.0
  %916 = vmatprep.subr.mxu0 0.0
  %917 = vmatpush1.msra.mxu0 0.0
  %918 = vmatprep.subr.mxu0 0.0
  %919 = vmatpush1.msra.mxu0 0.0
  %920 = vmatprep.subr.mxu0 0.0
  %921 = vmatpush1.msra.mxu0 0.0
  %922 = vmatprep.subr.mxu0 0.0
  %923 = vmatpush1.msra.mxu0 0.0
  %924 = vmatprep.subr.mxu0 0.0
  %925 = vmatpush1.msra.mxu0 0.0
  %926 = vmatprep.subr.mxu0 0.0
  %927 = vmatpush1.msra.mxu0 0.0
  %928 = vmatprep.subr.mxu0 0.0
  %929 = vmatpush1.msra.mxu0 0.0
  %930 = vmatprep.subr.mxu0 0.0
  %931 = vmatpush1.msra.mxu0 0.0
  %932 = vmatprep.subr.mxu0 0.0
  %933 = vmatpush1.msra.mxu0 0.0
  %934 = vmatprep.subr.mxu0 0.0
  %935 = vmatpush1.msra.mxu0 0.0
  %936 = vmatprep.subr.mxu0 0.0
  %937 = vmatpush1.msra.mxu0 0.0
  %938 = vmatprep.subr.mxu0 0.0
  %939 = vmatpush1.msra.mxu0 0.0
  %940 = vmatprep.subr.mxu0 0.0
  %941 = vmatpush1.msra.mxu0 0.0
  %942 = vmatprep.subr.mxu0 0.0
  %943 = vmatpush1.msra.mxu0 0.0
  %944 = vmatprep.subr.mxu0 0.0
  %945 = vmatpush1.msra.mxu0 0.0
  %946 = vmatprep.subr.mxu0 0.0
  %947 = vmatpush1.msra.mxu0 0.0
  %948 = vmatprep.subr.mxu0 0.0
  %949 = vmatpush1.msra.mxu0 0.0
  %950 = vmatprep.subr.mxu0 0.0
  %951 = vmatpush1.msra.mxu0 0.0
  %952 = vmatprep.subr.mxu0 0.0
  %953 = vmatpush1.msra.mxu0 0.0
  %954 = vmatprep.subr.mxu0 0.0
  %955 = vmatpush1.msra.mxu0 0.0
  %956 = vmatprep.mubr.f32.mxu0 0.0
  %957 = vmatmul.mubr.f32.gmra.mrb[0].mxu0 %v890
  %v958 = vpop.f32.mrb[0].mxu0
  %v959 = vadd.f32 %v164, %v958
  %v960 = vpop.f32.mrb[0].mxu0
  %961 = vdwg.mxu0
  %v962 = vxor.u32 %v959, 2147483648
  %v963 = vmul.f32 %v962, 1.442695
  %v964 = vpow.pop %v963
  %v965 = vadd.f32 %v964, 1.0
  %v966 = vrcp.pop %v965
  %v967 = vmul.f32 1.0, %v966
  %v968 = vtanh.pop %v959
  %v969 = vmul.f32 %v967, %v886
  %971 = vrot.lane.b32.xlu0 %v968, 64
  %v972 = vpop.permute.xlu0 %971
  %v974 = vmul.f32 %v967, %v972
  %976 = vrot.lane.b32.xlu0 %v974, 32
  %v977 = vpop.permute.xlu0 %976
  %v979 = vadd.f32 %v969, %v977
  %v980 = vtanh.pop %v979
  %982 = vrot.lane.b32.xlu0 %v980, 64
  %v983 = vpop.permute.xlu0 %982
  %v985 = vmul.f32 %v967, %v983
  %v986 = vsel %vm180, %v985, %v885
  %v987 = vld [vmem:[%s2 + $0x58] sm:$0xff]
  %v988 = vld [vmem:[%s2 + $0x60] sm:$0xff]
  %v989 = vld [vmem:[%s2 + $0x68] sm:$0xff]
  %v990 = vld [vmem:[%s2 + $0x70] sm:$0xff]
  %v991 = vld [vmem:[%s2 + $0x78] sm:$0xff]
  %v992 = vld [vmem:[%s2 + $0x80] sm:$0xff]
  %v993 = vld [vmem:[%s2 + $0x88] sm:$0x1]
  %995 = vrot.lane.b32.xlu0 %v986, 32
  %v996 = vpop.permute.xlu0 %995
  %v997 = vsel %vm181, %v996, 0
  %999 = vmatprep.subr.mxu0 0.0
  %1000 = vmatpush1.msra.mxu0 %v989
  %1001 = vmatprep.subr.mxu0 0.0
  %1002 = vmatpush1.msra.mxu0 %v990
  %1003 = vmatprep.subr.mxu0 0.0
  %1004 = vmatpush1.msra.mxu0 %v991
  %1005 = vmatprep.subr.mxu0 0.0
  %1006 = vmatpush1.msra.mxu0 %v992
  %1007 = vmatprep.subr.mxu0 0.0
  %1008 = vmatpush1.msra.mxu0 0.0
  %1009 = vmatprep.subr.mxu0 0.0
  %1010 = vmatpush1.msra.mxu0 0.0
  %1011 = vmatprep.subr.mxu0 0.0
  %1012 = vmatpush1.msra.mxu0 0.0
  %1013 = vmatprep.subr.mxu0 0.0
  %1014 = vmatpush1.msra.mxu0 0.0
  %1015 = vmatprep.subr.mxu0 0.0
  %1016 = vmatpush1.msra.mxu0 0.0
  %1017 = vmatprep.subr.mxu0 0.0
  %1018 = vmatpush1.msra.mxu0 0.0
  %1019 = vmatprep.subr.mxu0 0.0
  %1020 = vmatpush1.msra.mxu0 0.0
  %1021 = vmatprep.subr.mxu0 0.0
  %1022 = vmatpush1.msra.mxu0 0.0
  %1023 = vmatprep.subr.mxu0 0.0
  %1024 = vmatpush1.msra.mxu0 0.0
  %1025 = vmatprep.subr.mxu0 0.0
  %1026 = vmatpush1.msra.mxu0 0.0
  %1027 = vmatprep.subr.mxu0 0.0
  %1028 = vmatpush1.msra.mxu0 0.0
  %1029 = vmatprep.subr.mxu0 0.0
  %1030 = vmatpush1.msra.mxu0 0.0
  %1031 = vmatprep.subr.mxu0 0.0
  %1032 = vmatpush1.msra.mxu0 0.0
  %1033 = vmatprep.subr.mxu0 0.0
  %1034 = vmatpush1.msra.mxu0 0.0
  %1035 = vmatprep.subr.mxu0 0.0
  %1036 = vmatpush1.msra.mxu0 0.0
  %1037 = vmatprep.subr.mxu0 0.0
  %1038 = vmatpush1.msra.mxu0 0.0
  %1039 = vmatprep.subr.mxu0 0.0
  %1040 = vmatpush1.msra.mxu0 0.0
  %1041 = vmatprep.subr.mxu0 0.0
  %1042 = vmatpush1.msra.mxu0 0.0
  %1043 = vmatprep.subr.mxu0 0.0
  %1044 = vmatpush1.msra.mxu0 0.0
  %1045 = vmatprep.subr.mxu0 0.0
  %1046 = vmatpush1.msra.mxu0 0.0
  %1047 = vmatprep.subr.mxu0 0.0
  %1048 = vmatpush1.msra.mxu0 0.0
  %1049 = vmatprep.subr.mxu0 0.0
  %1050 = vmatpush1.msra.mxu0 0.0
  %1051 = vmatprep.subr.mxu0 0.0
  %1052 = vmatpush1.msra.mxu0 0.0
  %1053 = vmatprep.subr.mxu0 0.0
  %1054 = vmatpush1.msra.mxu0 0.0
  %1055 = vmatprep.subr.mxu0 0.0
  %1056 = vmatpush1.msra.mxu0 0.0
  %1057 = vmatprep.subr.mxu0 0.0
  %1058 = vmatpush1.msra.mxu0 0.0
  %1059 = vmatprep.subr.mxu0 0.0
  %1060 = vmatpush1.msra.mxu0 0.0
  %1061 = vmatprep.subr.mxu0 0.0
  %1062 = vmatpush1.msra.mxu0 0.0
  %1063 = vmatprep.mubr.f32.mxu0 0.0
  %1064 = vmatmul.mubr.f32.gmra.mrb[0].mxu0 %v997
  %v1065 = vpop.f32.mrb[0].mxu0
  %v1066 = vadd.f32 0.0, %v1065
  %v1067 = vpop.f32.mrb[0].mxu0
  %1068 = vdwg.mxu0
  %vm1069 = vcmask 130048
  %v1070 = vsel %vm1069, %v167, 0
  %1072 = vmatprep.subr.mxu0 0.0
  %1073 = vmatpush1.msra.mxu0 %v987
  %1074 = vmatprep.subr.mxu0 0.0
  %1075 = vmatpush1.msra.mxu0 %v988
  %1076 = vmatprep.subr.mxu0 0.0
  %1077 = vmatpush1.msra.mxu0 0.0
  %1078 = vmatprep.subr.mxu0 0.0
  %1079 = vmatpush1.msra.mxu0 0.0
  %1080 = vmatprep.subr.mxu0 0.0
  %1081 = vmatpush1.msra.mxu0 0.0
  %1082 = vmatprep.subr.mxu0 0.0
  %1083 = vmatpush1.msra.mxu0 0.0
  %1084 = vmatprep.subr.mxu0 0.0
  %1085 = vmatpush1.msra.mxu0 0.0
  %1086 = vmatprep.subr.mxu0 0.0
  %1087 = vmatpush1.msra.mxu0 0.0
  %1088 = vmatprep.subr.mxu0 0.0
  %1089 = vmatpush1.msra.mxu0 0.0
  %1090 = vmatprep.subr.mxu0 0.0
  %1091 = vmatpush1.msra.mxu0 0.0
  %1092 = vmatprep.subr.mxu0 0.0
  %1093 = vmatpush1.msra.mxu0 0.0
  %1094 = vmatprep.subr.mxu0 0.0
  %1095 = vmatpush1.msra.mxu0 0.0
  %1096 = vmatprep.subr.mxu0 0.0
  %1097 = vmatpush1.msra.mxu0 0.0
  %1098 = vmatprep.subr.mxu0 0.0
  %1099 = vmatpush1.msra.mxu0 0.0
  %1100 = vmatprep.subr.mxu0 0.0
  %1101 = vmatpush1.msra.mxu0 0.0
  %1102 = vmatprep.subr.mxu0 0.0
  %1103 = vmatpush1.msra.mxu0 0.0
  %1104 = vmatprep.subr.mxu0 0.0
  %1105 = vmatpush1.msra.mxu0 0.0
  %1106 = vmatprep.subr.mxu0 0.0
  %1107 = vmatpush1.msra.mxu0 0.0
  %1108 = vmatprep.subr.mxu0 0.0
  %1109 = vmatpush1.msra.mxu0 0.0
  %1110 = vmatprep.subr.mxu0 0.0
  %1111 = vmatpush1.msra.mxu0 0.0
  %1112 = vmatprep.subr.mxu0 0.0
  %1113 = vmatpush1.msra.mxu0 0.0
  %1114 = vmatprep.subr.mxu0 0.0
  %1115 = vmatpush1.msra.mxu0 0.0
  %1116 = vmatprep.subr.mxu0 0.0
  %1117 = vmatpush1.msra.mxu0 0.0
  %1118 = vmatprep.subr.mxu0 0.0
  %1119 = vmatpush1.msra.mxu0 0.0
  %1120 = vmatprep.subr.mxu0 0.0
  %1121 = vmatpush1.msra.mxu0 0.0
  %1122 = vmatprep.subr.mxu0 0.0
  %1123 = vmatpush1.msra.mxu0 0.0
  %1124 = vmatprep.subr.mxu0 0.0
  %1125 = vmatpush1.msra.mxu0 0.0
  %1126 = vmatprep.subr.mxu0 0.0
  %1127 = vmatpush1.msra.mxu0 0.0
  %1128 = vmatprep.subr.mxu0 0.0
  %1129 = vmatpush1.msra.mxu0 0.0
  %1130 = vmatprep.subr.mxu0 0.0
  %1131 = vmatpush1.msra.mxu0 0.0
  %1132 = vmatprep.subr.mxu0 0.0
  %1133 = vmatpush1.msra.mxu0 0.0
  %1134 = vmatprep.subr.mxu0 0.0
  %1135 = vmatpush1.msra.mxu0 0.0
  %1136 = vmatprep.mubr.f32.mxu0 0.0
  %1137 = vmatmul.mubr.f32.gmra.mrb[0].mxu0 %v1070
  %v1138 = vpop.f32.mrb[0].mxu0
  %v1139 = vadd.f32 %v1066, %v1138
  %v1140 = vpop.f32.mrb[0].mxu0
  %1141 = vdwg.mxu0
  %v1142 = vlaneseq
  %v1143 = vshrl.u32 %v1142, 7
  %v1144 = vsub.s32 0, %v1143
  %v1145 = vrot.slane %v993, %v1144
  %v1146 = vadd.f32 %v1139, %v1145
  %v1147 = vmax.f32 %v1146, 0.0
  %v1148 = vld [vmem:[%s2 + $0x90] sm:$0xff]
  %v1149 = vld [vmem:[%s2 + $0x98] sm:$0xff]
  %v1150 = vld [vmem:[%s2 + $0xa0] sm:$0xff]
  %v1151 = vld [vmem:[%s2 + $0xa8] sm:$0xff]
  %v1152 = vld [vmem:[%s2 + $0xb0] sm:$0xff]
  %v1153 = vld [vmem:[%s2 + $0xb8] sm:$0xff]
  %v1154 = vld [vmem:[%s2 + $0xc0] sm:$0xff]
  %v1155 = vld [vmem:[%s2 + $0xc8] sm:$0xff]
  %v1156 = vld [vmem:[%s2 + $0xd0] sm:$0xff]
  %v1157 = vld [vmem:[%s2 + $0xd8] sm:$0xff]
  %v1158 = vld [vmem:[%s2 + $0xe0] sm:$0xff]
  %v1159 = vld [vmem:[%s2 + $0xe8] sm:$0xff]
  %v1160 = vld [vmem:[%s2 + $0xf0] sm:$0xff]
  %v1161 = vld [vmem:[%s2 + $0xf8] sm:$0xff]
  %v1162 = vld [vmem:[%s2 + $0x100] sm:$0xff]
  %v1163 = vld [vmem:[%s2 + $0x108] sm:$0xff]
  %v1164 = vld [vmem:[%s2 + $0x110] sm:$0x1]
  %v1165 = vlaneseq
  %v1166 = vshrl.u32 %v1165, 7
  %v1167 = vsub.s32 0, %v1166
  %v1168 = vrot.slane %v1164, %v1167
  %1169 = vmatprep.subr.mxu0 0.0
  %1170 = vmatpush1.msra.mxu0 %v1148
  %1171 = vmatprep.subr.mxu0 0.0
  %1172 = vmatpush1.msra.mxu0 %v1149
  %1173 = vmatprep.subr.mxu0 0.0
  %1174 = vmatpush1.msra.mxu0 %v1150
  %1175 = vmatprep.subr.mxu0 0.0
  %1176 = vmatpush1.msra.mxu0 %v1151
  %1177 = vmatprep.subr.mxu0 0.0
  %1178 = vmatpush1.msra.mxu0 %v1152
  %1179 = vmatprep.subr.mxu0 0.0
  %1180 = vmatpush1.msra.mxu0 %v1153
  %1181 = vmatprep.subr.mxu0 0.0
  %1182 = vmatpush1.msra.mxu0 %v1154
  %1183 = vmatprep.subr.mxu0 0.0
  %1184 = vmatpush1.msra.mxu0 %v1155
  %1185 = vmatprep.subr.mxu0 0.0
  %1186 = vmatpush1.msra.mxu0 %v1156
  %1187 = vmatprep.subr.mxu0 0.0
  %1188 = vmatpush1.msra.mxu0 %v1157
  %1189 = vmatprep.subr.mxu0 0.0
  %1190 = vmatpush1.msra.mxu0 %v1158
  %1191 = vmatprep.subr.mxu0 0.0
  %1192 = vmatpush1.msra.mxu0 %v1159
  %1193 = vmatprep.subr.mxu0 0.0
  %1194 = vmatpush1.msra.mxu0 %v1160
  %1195 = vmatprep.subr.mxu0 0.0
  %1196 = vmatpush1.msra.mxu0 %v1161
  %1197 = vmatprep.subr.mxu0 0.0
  %1198 = vmatpush1.msra.mxu0 %v1162
  %1199 = vmatprep.subr.mxu0 0.0
  %1200 = vmatpush1.msra.mxu0 %v1163
  %1201 = vmatprep.subr.mxu0 0.0
  %1202 = vmatpush1.msra.mxu0 0.0
  %1203 = vmatprep.subr.mxu0 0.0
  %1204 = vmatpush1.msra.mxu0 0.0
  %1205 = vmatprep.subr.mxu0 0.0
  %1206 = vmatpush1.msra.mxu0 0.0
  %1207 = vmatprep.subr.mxu0 0.0
  %1208 = vmatpush1.msra.mxu0 0.0
  %1209 = vmatprep.subr.mxu0 0.0
  %1210 = vmatpush1.msra.mxu0 0.0
  %1211 = vmatprep.subr.mxu0 0.0
  %1212 = vmatpush1.msra.mxu0 0.0
  %1213 = vmatprep.subr.mxu0 0.0
  %1214 = vmatpush1.msra.mxu0 0.0
  %1215 = vmatprep.subr.mxu0 0.0
  %1216 = vmatpush1.msra.mxu0 0.0
  %1217 = vmatprep.subr.mxu0 0.0
  %1218 = vmatpush1.msra.mxu0 0.0
  %1219 = vmatprep.subr.mxu0 0.0
  %1220 = vmatpush1.msra.mxu0 0.0
  %1221 = vmatprep.subr.mxu0 0.0
  %1222 = vmatpush1.msra.mxu0 0.0
  %1223 = vmatprep.subr.mxu0 0.0
  %1224 = vmatpush1.msra.mxu0 0.0
  %1225 = vmatprep.subr.mxu0 0.0
  %1226 = vmatpush1.msra.mxu0 0.0
  %1227 = vmatprep.subr.mxu0 0.0
  %1228 = vmatpush1.msra.mxu0 0.0
  %1229 = vmatprep.subr.mxu0 0.0
  %1230 = vmatpush1.msra.mxu0 0.0
  %1231 = vmatprep.subr.mxu0 0.0
  %1232 = vmatpush1.msra.mxu0 0.0
  %1233 = vmatprep.mubr.f32.mxu0 0.0
  %1234 = vmatmul.mubr.f32.gmra.mrb[0].mxu0 %v1147
  %v1235 = vpop.f32.mrb[0].mxu0
  %v1236 = vadd.f32 %v1168, %v1235
  %v1237 = vpop.f32.mrb[0].mxu0
  %1238 = vdwg.mxu0
  %v1239 = vmax.f32 %v1236, 0.0
  %v1240 = vld [vmem:[%s2 + $0x118] sm:$0xff]
  %v1241 = vld [vmem:[%s2 + $0x120] sm:$0xff]
  %v1242 = vld [vmem:[%s2 + $0x128] sm:$0xff]
  %v1243 = vld [vmem:[%s2 + $0x130] sm:$0xff]
  %v1244 = vld [vmem:[%s2 + $0x138] sm:$0xff]
  %v1245 = vld [vmem:[%s2 + $0x140] sm:$0xff]
  %v1246 = vld [vmem:[%s2 + $0x148] sm:$0xff]
  %v1247 = vld [vmem:[%s2 + $0x150] sm:$0xff]
  %v1248 = vld [vmem:[%s2 + $0x158] sm:$0xff]
  %v1249 = vld [vmem:[%s2 + $0x160] sm:$0xff]
  %v1250 = vld [vmem:[%s2 + $0x168] sm:$0xff]
  %v1251 = vld [vmem:[%s2 + $0x170] sm:$0xff]
  %v1252 = vld [vmem:[%s2 + $0x178] sm:$0xff]
  %v1253 = vld [vmem:[%s2 + $0x180] sm:$0xff]
  %v1254 = vld [vmem:[%s2 + $0x188] sm:$0xff]
  %v1255 = vld [vmem:[%s2 + $0x190] sm:$0xff]
  %v1256 = vld [vmem:[%s2 + $0x198] sm:$0x1]
  %v1257 = vlaneseq
  %v1258 = vshrl.u32 %v1257, 7
  %v1259 = vsub.s32 0, %v1258
  %v1260 = vrot.slane %v1256, %v1259
  %1261 = vmatprep.subr.mxu0 0.0
  %1262 = vmatpush1.msra.mxu0 %v1240
  %1263 = vmatprep.subr.mxu0 0.0
  %1264 = vmatpush1.msra.mxu0 %v1241
  %1265 = vmatprep.subr.mxu0 0.0
  %1266 = vmatpush1.msra.mxu0 %v1242
  %1267 = vmatprep.subr.mxu0 0.0
  %1268 = vmatpush1.msra.mxu0 %v1243
  %1269 = vmatprep.subr.mxu0 0.0
  %1270 = vmatpush1.msra.mxu0 %v1244
  %1271 = vmatprep.subr.mxu0 0.0
  %1272 = vmatpush1.msra.mxu0 %v1245
  %1273 = vmatprep.subr.mxu0 0.0
  %1274 = vmatpush1.msra.mxu0 %v1246
  %1275 = vmatprep.subr.mxu0 0.0
  %1276 = vmatpush1.msra.mxu0 %v1247
  %1277 = vmatprep.subr.mxu0 0.0
  %1278 = vmatpush1.msra.mxu0 %v1248
  %1279 = vmatprep.subr.mxu0 0.0
  %1280 = vmatpush1.msra.mxu0 %v1249
  %1281 = vmatprep.subr.mxu0 0.0
  %1282 = vmatpush1.msra.mxu0 %v1250
  %1283 = vmatprep.subr.mxu0 0.0
  %1284 = vmatpush1.msra.mxu0 %v1251
  %1285 = vmatprep.subr.mxu0 0.0
  %1286 = vmatpush1.msra.mxu0 %v1252
  %1287 = vmatprep.subr.mxu0 0.0
  %1288 = vmatpush1.msra.mxu0 %v1253
  %1289 = vmatprep.subr.mxu0 0.0
  %1290 = vmatpush1.msra.mxu0 %v1254
  %1291 = vmatprep.subr.mxu0 0.0
  %1292 = vmatpush1.msra.mxu0 %v1255
  %1293 = vmatprep.subr.mxu0 0.0
  %1294 = vmatpush1.msra.mxu0 0.0
  %1295 = vmatprep.subr.mxu0 0.0
  %1296 = vmatpush1.msra.mxu0 0.0
  %1297 = vmatprep.subr.mxu0 0.0
  %1298 = vmatpush1.msra.mxu0 0.0
  %1299 = vmatprep.subr.mxu0 0.0
  %1300 = vmatpush1.msra.mxu0 0.0
  %1301 = vmatprep.subr.mxu0 0.0
  %1302 = vmatpush1.msra.mxu0 0.0
  %1303 = vmatprep.subr.mxu0 0.0
  %1304 = vmatpush1.msra.mxu0 0.0
  %1305 = vmatprep.subr.mxu0 0.0
  %1306 = vmatpush1.msra.mxu0 0.0
  %1307 = vmatprep.subr.mxu0 0.0
  %1308 = vmatpush1.msra.mxu0 0.0
  %1309 = vmatprep.subr.mxu0 0.0
  %1310 = vmatpush1.msra.mxu0 0.0
  %1311 = vmatprep.subr.mxu0 0.0
  %1312 = vmatpush1.msra.mxu0 0.0
  %1313 = vmatprep.subr.mxu0 0.0
  %1314 = vmatpush1.msra.mxu0 0.0
  %1315 = vmatprep.subr.mxu0 0.0
  %1316 = vmatpush1.msra.mxu0 0.0
  %1317 = vmatprep.subr.mxu0 0.0
  %1318 = vmatpush1.msra.mxu0 0.0
  %1319 = vmatprep.subr.mxu0 0.0
  %1320 = vmatpush1.msra.mxu0 0.0
  %1321 = vmatprep.subr.mxu0 0.0
  %1322 = vmatpush1.msra.mxu0 0.0
  %1323 = vmatprep.subr.mxu0 0.0
  %1324 = vmatpush1.msra.mxu0 0.0
  %1325 = vmatprep.mubr.f32.mxu0 0.0
  %1326 = vmatmul.mubr.f32.gmra.mrb[0].mxu0 %v1239
  %v1327 = vpop.f32.mrb[0].mxu0
  %v1328 = vadd.f32 %v1260, %v1327
  %v1329 = vpop.f32.mrb[0].mxu0
  %1330 = vdwg.mxu0
  %1331 = vst [vmem:[%s3] sm:$0xff] %v1328
  // Predicated region
  $region14: #{otcs12_forward.1} parent=0 // pred_check
    _
  $region15: #{otcs12_forward.1} parent=0 // pred_check_branch
    %1333 = sbr.rel (0) target = $region17
  $region16: #{otcs12_forward.1} parent=0 // pred_region
    _
  $region17: #{otcs12_forward.1} parent=0 // pred_fallthru
    _
  // Predicated region
  $region18: #{otcs12_forward.1} parent=0 // pred_check
    _
  $region19: #{otcs12_forward.1} parent=0 // pred_check_branch
    %1335 = sbr.rel (0) target = $region21
  $region20: #{otcs12_forward.1} parent=0 // pred_region
    _
  $region21: #{otcs12_forward.1} parent=0 // pred_fallthru
    _

</llo_original>
